<compile_context>
chip_gen: v6e
topology: v6e:2x2x1
jax: 0.10.0
libtpu: 0.0.40
codegen_flags: <defaults>
</compile_context>

<pallas_src>
import functools

import jax
import jax.numpy as jnp
from jax.experimental import pallas as pl
from jax.experimental.pallas import tpu as pltpu


def _round_up(x, m):
    return ((x + m - 1) // m) * m


def _highlayer_kernel(head_ref, rel_ref, tail_ref, *refs,
                      dim, dim_p, hid_p, layer_num):
    """refs = (w1, b1, w2, b2, score, rmse) if layer_num >= 2 else
              (w2, b2, score, rmse).  All weight refs are VMEM-resident."""
    score_ref, rmse_ref = refs[-2], refs[-1]

    head = head_ref[...]                                   # [tb, dim_p] (bf16 or f32)
    rel = rel_ref[...]                                     # [tb, dim_p]
    f32 = jnp.float32

    if layer_num >= 2:
        w1_ref, b1_ref, w2_ref, b2_ref = refs[0], refs[1], refs[2], refs[3]
        b1 = b1_ref[...]                                   # [1, hid_p], implicit broadcast
        # First shared kg_mlp layer: split-W1 sum replaces the lane concat.
        # (head's padded lanes are zero, so the overlapping W1 rows are inert.)
        x = jnp.maximum(
            jnp.dot(head, w1_ref[0:dim_p, :], preferred_element_type=f32)
            + jnp.dot(rel, w1_ref[dim:dim + dim_p, :], preferred_element_type=f32)
            + b1, 0.0)
        # Remaining (layer_num - 2) applications of the SAME shared weights.
        n_rest = layer_num - 2
        if n_rest > 0:
            w1_hid = w1_ref[0:hid_p, :]                    # hoisted once

            def shared_layer(v):
                return jnp.maximum(
                    jnp.dot(v.astype(w1_hid.dtype), w1_hid,
                            preferred_element_type=f32) + b1, 0.0)

            if n_rest > 8:                                 # bound code size for deep stacks
                x = jax.lax.fori_loop(0, n_rest, lambda _, v: shared_layer(v), x)
            else:
                for _ in range(n_rest):
                    x = shared_layer(x)
        pre = jnp.dot(x.astype(w2_ref.dtype), w2_ref[0:hid_p, :],
                      preferred_element_type=f32)
        b2 = b2_ref[...]
    else:
        # layer_num == 1: kg_pred_mlp acts directly on the (virtual) concat.
        w2_ref, b2_ref = refs[0], refs[1]
        pre = (jnp.dot(head, w2_ref[0:dim_p, :], preferred_element_type=f32)
               + jnp.dot(rel, w2_ref[dim:dim + dim_p, :], preferred_element_type=f32))
        b2 = b2_ref[...]

    tail_pred = jax.nn.sigmoid(jnp.maximum(pre + b2, 0.0))   # [tb, dim_p] f32
    tail = tail_ref[...]                                     # f32 (padded cols are zero)

    # Per-row outputs; rmse's batch mean is finalized in the wrapper so padded
    # batch rows are excluded exactly.
    score = jax.nn.sigmoid(jnp.sum(tail * tail_pred, axis=1, keepdims=True))
    score_ref[...] = score.astype(score_ref.dtype)

    diff = tail - tail_pred
    if dim_p != dim:
        # Padded tail_pred lanes are sigmoid(0)=0.5; mask them out of the rmse
        # sum.  The divisor stays the ORIGINAL dim.
        col = jax.lax.broadcasted_iota(jnp.int32, diff.shape, 1)
        diff = jnp.where(col < dim, diff, 0.0)
    rmse_ref[...] = jnp.sqrt(
        jnp.sum(diff * diff, axis=1, keepdims=True) * (1.0 / dim)
    ).astype(rmse_ref.dtype)


def highlayer_forward(head, rel, tail, w1, b1, w2, b2, *,
                      dim, layer_num, block_b=None, use_bf16=True):
    """head/rel/tail: [B, dim] f32.  w1: [2*dim, 2*dim], b1: [1, 2*dim],
       w2: [2*dim, dim], b2: [1, dim].  Returns (score_kg [B], rmse_loss [])."""
    B = head.shape[0]
    hid = 2 * dim
    dim_p = _round_up(dim, 128)                       # lane-pad the embedding dim
    hid_p = _round_up(hid, 128)                       # lane-pad the hidden dim
    # One padded W1/W2 slab serves BOTH the split first layer (rows [0:dim_p]
    # and [dim:dim+dim_p]) and the shared hidden layers (rows [0:hid_p]).
    rows_k = _round_up(max(hid_p, dim + dim_p), 8)

    b1 = jnp.asarray(b1).reshape(1, -1)
    b2 = jnp.asarray(b2).reshape(1, -1)

    mm_dtype = jnp.bfloat16 if use_bf16 else jnp.float32
    mm_bytes = 2 if use_bf16 else 4
    has_shared = layer_num >= 2

    # ---- VMEM budget -> batch-tile size -----------------------------------
    weight_bytes = rows_k * dim_p * mm_bytes + dim_p * 4           # w2 + b2
    if has_shared:
        weight_bytes += rows_k * hid_p * mm_bytes + hid_p * 4      # w1 + b1
    per_row = (2 * dim_p * mm_bytes + dim_p * 4) * 2   # head/rel/tail, double-buffered
    per_row += 2 * hid_p * 4                           # f32 hidden intermediate + temps
    per_row += 2 * dim_p * 4                           # tail_pred / diff temps
    per_row += 16                                      # per-row outputs
    budget = 40 * (1 << 20)                            # fits v7x 64 MiB with headroom
    tb = max((budget - weight_bytes) // per_row, 8)
    tb = min(tb, 2048)
    if block_b is not None:
        tb = min(tb, max(int(block_b), 8))
    # Keep >= 2 grid steps whenever the batch allows it: v7x's two TensorCores
    # split the "parallel" batch axis.
    tb = min(tb, max((B + 1) // 2, 8))
    tb = _round_up(int(tb), 8)
    bp = _round_up(B, tb)
    num_tiles = bp // tb

    # ---- pad + cast operands ----------------------------------------------
    def pad2d(a, rows, cols):
        r, c = a.shape
        if (r, c) == (rows, cols):
            return a
        return jnp.zeros((rows, cols), a.dtype).at[:r, :c].set(a)

    head_p = pad2d(head, bp, dim_p).astype(mm_dtype)   # matmul operand -> bf16 ok
    rel_p = pad2d(rel, bp, dim_p).astype(mm_dtype)
    tail_p = pad2d(tail, bp, dim_p)                    # stays f32 (elementwise use)
    args = [head_p, rel_p, tail_p]
    weight_args = []
    if has_shared:
        weight_args.append(pad2d(w1, rows_k, hid_p).astype(mm_dtype))
        weight_args.append(pad2d(b1, 1, hid_p))        # biases stay f32
    weight_args.append(pad2d(w2, rows_k, dim_p).astype(mm_dtype))
    weight_args.append(pad2d(b2, 1, dim_p))
    args += weight_args

    kernel = functools.partial(_highlayer_kernel, dim=dim, dim_p=dim_p,
                               hid_p=hid_p, layer_num=layer_num)

    est_vmem = weight_bytes + per_row * tb
    vmem_limit = int(min(max(est_vmem * 3 // 2, 32 * (1 << 20)), 60 * (1 << 20)))

    w_acc_bytes = rows_k * dim_p * mm_bytes + (rows_k * hid_p * mm_bytes if has_shared else 0)
    cost = pl.CostEstimate(
        flops=2 * B * hid * hid * max(layer_num - 1, 0) + 2 * B * hid * dim,
        transcendentals=B * (dim + 1),
        bytes_accessed=3 * B * dim * 4 + w_acc_bytes + 2 * B * 4)

    batch_spec = pl.BlockSpec((tb, dim_p), lambda i: (i, 0))

    def build_call(single_buffer_weights):
        def pinned(shape):
            if single_buffer_weights:
                # Constant index_map -> the block is never re-fetched, so one
                # VMEM buffer suffices (halves pinned-weight VMEM).
                return pl.BlockSpec(shape, lambda i: (0, 0),
                                    pipeline_mode=pl.Buffered(1))
            return pl.BlockSpec(shape, lambda i: (0, 0))

        in_specs = [batch_spec, batch_spec, batch_spec]
        in_specs += [pinned(a.shape) for a in weight_args]
        return pl.pallas_call(
            kernel,
            out_shape=(
                jax.ShapeDtypeStruct((bp, 1), jnp.float32),
                jax.ShapeDtypeStruct((bp, 1), jnp.float32),
            ),
            grid=(num_tiles,),
            in_specs=in_specs,
            out_specs=(
                pl.BlockSpec((tb, 1), lambda i: (i, 0)),
                pl.BlockSpec((tb, 1), lambda i: (i, 0)),
            ),
            compiler_params=pltpu.CompilerParams(
                dimension_semantics=("parallel",),
                vmem_limit_bytes=vmem_limit),
            cost_estimate=cost,
        )

    try:
        score_col, rmse_col = build_call(True)(*args)
    except Exception:
        # pl.Buffered(1) unsupported on this jax/Mosaic build: fall back to the
        # default double-buffered pinned weights so the kernel still runs.
        score_col, rmse_col = build_call(False)(*args)

    score_kg = score_col[:B, 0]
    rmse_loss = jnp.mean(rmse_col[:B, 0])
    return score_kg, rmse_loss


def _torch_linear_init(key, fan_in, fan_out):
    """Deterministic init matching torch.nn.Linear default (U(-k, k), k=1/sqrt(fan_in)).
       Weight returned already transposed to [in, out] for x @ W."""
    kw, kb = jax.random.split(key)
    bound = 1.0 / jnp.sqrt(float(fan_in))
    w = jax.random.uniform(kw, (fan_in, fan_out), jnp.float32, -bound, bound)
    b = jax.random.uniform(kb, (1, fan_out), jnp.float32, -bound, bound)
    return w, b


def reference_forward(head, rel, tail, w1, b1, w2, b2, *, dim, layer_num):
    x = jnp.concatenate([head, rel], axis=1)
    for _ in range(layer_num - 1):
        x = jnp.maximum(x @ w1 + b1, 0.0)
    tp = jax.nn.sigmoid(jnp.maximum(x @ w2 + b2, 0.0))
    score = jax.nn.sigmoid(jnp.sum(tail * tp, axis=1))
    rmse = jnp.mean(jnp.sqrt(jnp.sum((tail - tp) ** 2, axis=1) / dim))
    return score, rmse


if __name__ == "__main__":
    key = jax.random.PRNGKey(0)

    def run_case(B, dim, layer_num, block_b, use_bf16, atol, subkey):
        k_h, k_r, k_t, k_w1, k_w2 = jax.random.split(subkey, 5)
        head = jax.random.normal(k_h, (B, dim), jnp.float32)
        rel = jax.random.normal(k_r, (B, dim), jnp.float32)
        tail = jax.random.normal(k_t, (B, dim), jnp.float32)
        # kg_mlp: Linear(2*dim, 2*dim); kg_pred_mlp: Linear(2*dim, dim)
        w1, b1 = _torch_linear_init(k_w1, 2 * dim, 2 * dim)
        w2, b2 = _torch_linear_init(k_w2, 2 * dim, dim)

        score, rmse = highlayer_forward(head, rel, tail, w1, b1, w2, b2,
                                        dim=dim, layer_num=layer_num,
                                        block_b=block_b, use_bf16=use_bf16)
        jax.block_until_ready((score, rmse))

        score_ref, rmse_ref = reference_forward(head, rel, tail, w1, b1, w2, b2,
                                                dim=dim, layer_num=layer_num)
        assert score.shape == (B,)
        assert jnp.allclose(score, score_ref, atol=atol), (B, layer_num, use_bf16)
        assert jnp.allclose(rmse, rmse_ref, atol=atol), (B, layer_num, use_bf16)

    keys = jax.random.split(key, 4)
    # bf16 MXU path (default), single tile, lane-padded dim (32 -> 128)
    run_case(B=8, dim=32, layer_num=3, block_b=None, use_bf16=True,
             atol=1e-1, subkey=keys[0])
    # exact f32 path, multi-tile with batch + lane padding (40 rows -> 3 tiles of 16)
    run_case(B=40, dim=32, layer_num=3, block_b=16, use_bf16=False,
             atol=1e-5, subkey=keys[1])
    # layer_num == 1 edge case (no shared kg_mlp layers; w1/b1 never passed)
    run_case(B=8, dim=32, layer_num=1, block_b=None, use_bf16=False,
             atol=1e-5, subkey=keys[2])
    # lane-aligned dim (no padding path), 2 grid steps, bf16
    run_case(B=16, dim=128, layer_num=2, block_b=None, use_bf16=True,
             atol=1e-1, subkey=keys[3])

    print("KERNEL_OK")
</pallas_src>

<mosaic_0001>
module attributes {stable_mosaic.version = 11 : i64} {
  func.func @_highlayer_kernel(%arg0: i32, %arg1: memref<8x128xbf16, #tpu.memory_space<vmem>>, %arg2: memref<8x128xbf16, #tpu.memory_space<vmem>>, %arg3: memref<8x128xf32, #tpu.memory_space<vmem>>, %arg4: memref<160x128xbf16, #tpu.memory_space<vmem>>, %arg5: memref<1x128xf32, #tpu.memory_space<vmem>>, %arg6: memref<160x128xbf16, #tpu.memory_space<vmem>>, %arg7: memref<1x128xf32, #tpu.memory_space<vmem>>, %arg8: memref<8x1xf32, #tpu.memory_space<vmem>>, %arg9: memref<8x1xf32, #tpu.memory_space<vmem>>) attributes {dimension_semantics = [#tpu.dimension_semantics<parallel>], iteration_bounds = array<i64: 1>, scalar_prefetch = 0 : i64, scratch_operands = 0 : i64, tpu.core_type = #tpu.core_type<tc>, window_params = [{transform_indices = @transform_0, window_bounds = array<i64: 8, 128>}, {transform_indices = @transform_1, window_bounds = array<i64: 8, 128>}, {transform_indices = @transform_2, window_bounds = array<i64: 8, 128>}, {pipeline_mode = #tpu.pipeline_mode<synchronous>, transform_indices = @transform_3, window_bounds = array<i64: 160, 128>}, {pipeline_mode = #tpu.pipeline_mode<synchronous>, transform_indices = @transform_4, window_bounds = array<i64: 1, 128>}, {pipeline_mode = #tpu.pipeline_mode<synchronous>, transform_indices = @transform_5, window_bounds = array<i64: 160, 128>}, {pipeline_mode = #tpu.pipeline_mode<synchronous>, transform_indices = @transform_6, window_bounds = array<i64: 1, 128>}, {transform_indices = @transform_7, window_bounds = array<i64: 8, 1>}, {transform_indices = @transform_8, window_bounds = array<i64: 8, 1>}]} {
    %c0 = arith.constant 0 : index
    %c0_0 = arith.constant 0 : index
    %0 = vector.load %arg1[%c0, %c0_0] : memref<8x128xbf16, #tpu.memory_space<vmem>>, vector<8x128xbf16>
    %c0_1 = arith.constant 0 : index
    %c0_2 = arith.constant 0 : index
    %1 = vector.load %arg2[%c0_1, %c0_2] : memref<8x128xbf16, #tpu.memory_space<vmem>>, vector<8x128xbf16>
    %c0_3 = arith.constant 0 : index
    %c0_4 = arith.constant 0 : index
    %2 = vector.load %arg5[%c0_3, %c0_4] : memref<1x128xf32, #tpu.memory_space<vmem>>, vector<1x128xf32>
    %c0_5 = arith.constant 0 : index
    %c0_6 = arith.constant 0 : index
    %3 = vector.load %arg4[%c0_5, %c0_6] : memref<160x128xbf16, #tpu.memory_space<vmem>>, vector<128x128xbf16>
    %cst = arith.constant dense<0.000000e+00> : vector<8x128xf32>
    %4 = tpu.matmul %0, %3, %cst {dimension_numbers = #tpu.dot_dimension_numbers<[1], [0], [0], [1], [0, 0, 1, 1], [], []>} : vector<8x128xbf16>, vector<128x128xbf16>, vector<8x128xf32> -> vector<8x128xf32>
    %c32 = arith.constant 32 : index
    %c0_7 = arith.constant 0 : index
    %5 = vector.load %arg4[%c32, %c0_7] : memref<160x128xbf16, #tpu.memory_space<vmem>>, vector<128x128xbf16>
    %cst_8 = arith.constant dense<0.000000e+00> : vector<8x128xf32>
    %6 = tpu.matmul %1, %5, %cst_8 {dimension_numbers = #tpu.dot_dimension_numbers<[1], [0], [0], [1], [0, 0, 1, 1], [], []>} : vector<8x128xbf16>, vector<128x128xbf16>, vector<8x128xf32> -> vector<8x128xf32>
    %7 = arith.addf %4, %6 : vector<8x128xf32>
    %8 = vector.broadcast %2 : vector<1x128xf32> to vector<8x128xf32>
    %9 = arith.addf %7, %8 : vector<8x128xf32>
    %cst_9 = arith.constant 0.000000e+00 : f32
    %10 = vector.broadcast %cst_9 : f32 to vector<8x128xf32>
    %11 = arith.maximumf %9, %10 : vector<8x128xf32>
    %c0_10 = arith.constant 0 : index
    %c0_11 = arith.constant 0 : index
    %12 = vector.load %arg4[%c0_10, %c0_11] : memref<160x128xbf16, #tpu.memory_space<vmem>>, vector<128x128xbf16>
    %13 = arith.truncf %11 : vector<8x128xf32> to vector<8x128xbf16>
    %cst_12 = arith.constant dense<0.000000e+00> : vector<8x128xf32>
    %14 = tpu.matmul %13, %12, %cst_12 {dimension_numbers = #tpu.dot_dimension_numbers<[1], [0], [0], [1], [0, 0, 1, 1], [], []>} : vector<8x128xbf16>, vector<128x128xbf16>, vector<8x128xf32> -> vector<8x128xf32>
    %15 = vector.broadcast %2 : vector<1x128xf32> to vector<8x128xf32>
    %16 = arith.addf %14, %15 : vector<8x128xf32>
    %cst_13 = arith.constant 0.000000e+00 : f32
    %17 = vector.broadcast %cst_13 : f32 to vector<8x128xf32>
    %18 = arith.maximumf %16, %17 : vector<8x128xf32>
    %19 = arith.truncf %18 : vector<8x128xf32> to vector<8x128xbf16>
    %c0_14 = arith.constant 0 : index
    %c0_15 = arith.constant 0 : index
    %20 = vector.load %arg6[%c0_14, %c0_15] : memref<160x128xbf16, #tpu.memory_space<vmem>>, vector<128x128xbf16>
    %cst_16 = arith.constant dense<0.000000e+00> : vector<8x128xf32>
    %21 = tpu.matmul %19, %20, %cst_16 {dimension_numbers = #tpu.dot_dimension_numbers<[1], [0], [0], [1], [0, 0, 1, 1], [], []>} : vector<8x128xbf16>, vector<128x128xbf16>, vector<8x128xf32> -> vector<8x128xf32>
    %c0_17 = arith.constant 0 : index
    %c0_18 = arith.constant 0 : index
    %22 = vector.load %arg7[%c0_17, %c0_18] : memref<1x128xf32, #tpu.memory_space<vmem>>, vector<1x128xf32>
    %23 = vector.broadcast %22 : vector<1x128xf32> to vector<8x128xf32>
    %24 = arith.addf %21, %23 : vector<8x128xf32>
    %cst_19 = arith.constant 0.000000e+00 : f32
    %25 = vector.broadcast %cst_19 : f32 to vector<8x128xf32>
    %26 = arith.maximumf %24, %25 : vector<8x128xf32>
    %27 = arith.negf %26 : vector<8x128xf32>
    %28 = math.exp %27 : vector<8x128xf32>
    %cst_20 = arith.constant 1.000000e+00 : f32
    %29 = vector.broadcast %cst_20 : f32 to vector<8x128xf32>
    %30 = arith.addf %29, %28 : vector<8x128xf32>
    %31 = arith.divf %29, %30 : vector<8x128xf32>
    %c0_21 = arith.constant 0 : index
    %c0_22 = arith.constant 0 : index
    %32 = vector.load %arg3[%c0_21, %c0_22] : memref<8x128xf32, #tpu.memory_space<vmem>>, vector<8x128xf32>
    %33 = arith.mulf %32, %31 : vector<8x128xf32>
    %cst_23 = arith.constant dense<0.000000e+00> : vector<8xf32>
    %34 = vector.multi_reduction <add>, %33, %cst_23 [1] : vector<8x128xf32> to vector<8xf32>
    %35 = vector.shape_cast %34 : vector<8xf32> to vector<8x1xf32>
    %36 = arith.negf %35 : vector<8x1xf32>
    %37 = math.exp %36 : vector<8x1xf32>
    %cst_24 = arith.constant 1.000000e+00 : f32
    %38 = vector.broadcast %cst_24 : f32 to vector<8x1xf32>
    %39 = arith.addf %38, %37 : vector<8x1xf32>
    %40 = arith.divf %38, %39 : vector<8x1xf32>
    %c0_25 = arith.constant 0 : index
    %c0_26 = arith.constant 0 : index
    %41 = vector.load %arg8[%c0_25, %c0_26] : memref<8x1xf32, #tpu.memory_space<vmem>>, vector<8x1xf32>
    tpu.vector_store %arg8[%c0_25, %c0_26], %40 {strides = array<i32>} : memref<8x1xf32, #tpu.memory_space<vmem>>, vector<8x1xf32>,
    %42 = arith.subf %32, %31 : vector<8x128xf32>
    %43 = tpu.iota {dimensions = array<i32: 1>} : vector<8x128xi32>
    %c32_i32 = arith.constant 32 : i32
    %44 = vector.broadcast %c32_i32 : i32 to vector<8x128xi32>
    %45 = arith.cmpi slt, %43, %44 : vector<8x128xi32>
    %cst_27 = arith.constant 0.000000e+00 : f32
    %46 = vector.broadcast %cst_27 : f32 to vector<8x128xf32>
    %47 = arith.select %45, %42, %46 : vector<8x128xi1>, vector<8x128xf32>
    %48 = arith.mulf %47, %47 : vector<8x128xf32>
    %cst_28 = arith.constant dense<0.000000e+00> : vector<8xf32>
    %49 = vector.multi_reduction <add>, %48, %cst_28 [1] : vector<8x128xf32> to vector<8xf32>
    %50 = vector.shape_cast %49 : vector<8xf32> to vector<8x1xf32>
    %cst_29 = arith.constant 3.125000e-02 : f32
    %51 = vector.broadcast %cst_29 : f32 to vector<8x1xf32>
    %52 = arith.mulf %50, %51 : vector<8x1xf32>
    %53 = math.sqrt %52 : vector<8x1xf32>
    %c0_30 = arith.constant 0 : index
    %c0_31 = arith.constant 0 : index
    %54 = vector.load %arg9[%c0_30, %c0_31] : memref<8x1xf32, #tpu.memory_space<vmem>>, vector<8x1xf32>
    tpu.vector_store %arg9[%c0_30, %c0_31], %53 {strides = array<i32>} : memref<8x1xf32, #tpu.memory_space<vmem>>, vector<8x1xf32>,
    return
  }
  func.func @transform_0(%arg0: i32) -> (i32, i32) {
    %c0_i32 = arith.constant 0 : i32
    %c0_i32_0 = arith.constant 0 : i32
    return %arg0, %c0_i32 : i32, i32
  }
  func.func @transform_1(%arg0: i32) -> (i32, i32) {
    %c0_i32 = arith.constant 0 : i32
    %c0_i32_0 = arith.constant 0 : i32
    return %arg0, %c0_i32 : i32, i32
  }
  func.func @transform_2(%arg0: i32) -> (i32, i32) {
    %c0_i32 = arith.constant 0 : i32
    %c0_i32_0 = arith.constant 0 : i32
    return %arg0, %c0_i32 : i32, i32
  }
  func.func @transform_3(%arg0: i32) -> (i32, i32) {
    %c0_i32 = arith.constant 0 : i32
    %c0_i32_0 = arith.constant 0 : i32
    %c0_i32_1 = arith.constant 0 : i32
    return %c0_i32, %c0_i32_0 : i32, i32
  }
  func.func @transform_4(%arg0: i32) -> (i32, i32) {
    %c0_i32 = arith.constant 0 : i32
    %c0_i32_0 = arith.constant 0 : i32
    %c0_i32_1 = arith.constant 0 : i32
    return %c0_i32, %c0_i32_0 : i32, i32
  }
  func.func @transform_5(%arg0: i32) -> (i32, i32) {
    %c0_i32 = arith.constant 0 : i32
    %c0_i32_0 = arith.constant 0 : i32
    %c0_i32_1 = arith.constant 0 : i32
    return %c0_i32, %c0_i32_0 : i32, i32
  }
  func.func @transform_6(%arg0: i32) -> (i32, i32) {
    %c0_i32 = arith.constant 0 : i32
    %c0_i32_0 = arith.constant 0 : i32
    %c0_i32_1 = arith.constant 0 : i32
    return %c0_i32, %c0_i32_0 : i32, i32
  }
  func.func @transform_7(%arg0: i32) -> (i32, i32) {
    %c0_i32 = arith.constant 0 : i32
    %c0_i32_0 = arith.constant 0 : i32
    return %arg0, %c0_i32 : i32, i32
  }
  func.func @transform_8(%arg0: i32) -> (i32, i32) {
    %c0_i32 = arith.constant 0 : i32
    %c0_i32_0 = arith.constant 0 : i32
    return %arg0, %c0_i32 : i32, i32
  }
}

module attributes {stable_mosaic.version = 11 : i64} {
  func.func @_highlayer_kernel(%arg0: i32, %arg1: memref<8x128xbf16, #tpu.memory_space<vmem>>, %arg2: memref<8x128xbf16, #tpu.memory_space<vmem>>, %arg3: memref<8x128xf32, #tpu.memory_space<vmem>>, %arg4: memref<160x128xbf16, #tpu.memory_space<vmem>>, %arg5: memref<1x128xf32, #tpu.memory_space<vmem>>, %arg6: memref<160x128xbf16, #tpu.memory_space<vmem>>, %arg7: memref<1x128xf32, #tpu.memory_space<vmem>>, %arg8: memref<8x1xf32, #tpu.memory_space<vmem>>, %arg9: memref<8x1xf32, #tpu.memory_space<vmem>>) attributes {dimension_semantics = [#tpu.dimension_semantics<parallel>], iteration_bounds = array<i64: 1>, scalar_prefetch = 0 : i64, scratch_operands = 0 : i64, tpu.core_type = #tpu.core_type<tc>, window_params = [{transform_indices = @transform_0, window_bounds = array<i64: 8, 128>}, {transform_indices = @transform_1, window_bounds = array<i64: 8, 128>}, {transform_indices = @transform_2, window_bounds = array<i64: 8, 128>}, {pipeline_mode = #tpu.pipeline_mode<synchronous>, transform_indices = @transform_3, window_bounds = array<i64: 160, 128>}, {pipeline_mode = #tpu.pipeline_mode<synchronous>, transform_indices = @transform_4, window_bounds = array<i64: 1, 128>}, {pipeline_mode = #tpu.pipeline_mode<synchronous>, transform_indices = @transform_5, window_bounds = array<i64: 160, 128>}, {pipeline_mode = #tpu.pipeline_mode<synchronous>, transform_indices = @transform_6, window_bounds = array<i64: 1, 128>}, {transform_indices = @transform_7, window_bounds = array<i64: 8, 1>}, {transform_indices = @transform_8, window_bounds = array<i64: 8, 1>}]} {
    %c0 = arith.constant 0 : index
    %c0_0 = arith.constant 0 : index
    %0 = vector.load %arg1[%c0, %c0_0] : memref<8x128xbf16, #tpu.memory_space<vmem>>, vector<8x128xbf16>
    %c0_1 = arith.constant 0 : index
    %c0_2 = arith.constant 0 : index
    %1 = vector.load %arg2[%c0_1, %c0_2] : memref<8x128xbf16, #tpu.memory_space<vmem>>, vector<8x128xbf16>
    %c0_3 = arith.constant 0 : index
    %c0_4 = arith.constant 0 : index
    %2 = vector.load %arg5[%c0_3, %c0_4] : memref<1x128xf32, #tpu.memory_space<vmem>>, vector<1x128xf32>
    %c0_5 = arith.constant 0 : index
    %c0_6 = arith.constant 0 : index
    %3 = vector.load %arg4[%c0_5, %c0_6] : memref<160x128xbf16, #tpu.memory_space<vmem>>, vector<128x128xbf16>
    %cst = arith.constant dense<0.000000e+00> : vector<8x128xf32>
    %4 = tpu.matmul %0, %3, %cst {dimension_numbers = #tpu.dot_dimension_numbers<[1], [0], [0], [1], [0, 0, 1, 1], [], []>} : vector<8x128xbf16>, vector<128x128xbf16>, vector<8x128xf32> -> vector<8x128xf32>
    %c32 = arith.constant 32 : index
    %c0_7 = arith.constant 0 : index
    %5 = vector.load %arg4[%c32, %c0_7] : memref<160x128xbf16, #tpu.memory_space<vmem>>, vector<128x128xbf16>
    %cst_8 = arith.constant dense<0.000000e+00> : vector<8x128xf32>
    %6 = tpu.matmul %1, %5, %cst_8 {dimension_numbers = #tpu.dot_dimension_numbers<[1], [0], [0], [1], [0, 0, 1, 1], [], []>} : vector<8x128xbf16>, vector<128x128xbf16>, vector<8x128xf32> -> vector<8x128xf32>
    %7 = arith.addf %4, %6 : vector<8x128xf32>
    %8 = vector.broadcast %2 : vector<1x128xf32> to vector<8x128xf32>
    %9 = arith.addf %7, %8 : vector<8x128xf32>
    %cst_9 = arith.constant 0.000000e+00 : f32
    %10 = vector.broadcast %cst_9 : f32 to vector<8x128xf32>
    %11 = arith.maximumf %9, %10 : vector<8x128xf32>
    %c0_10 = arith.constant 0 : index
    %c0_11 = arith.constant 0 : index
    %12 = vector.load %arg4[%c0_10, %c0_11] : memref<160x128xbf16, #tpu.memory_space<vmem>>, vector<128x128xbf16>
    %13 = arith.truncf %11 : vector<8x128xf32> to vector<8x128xbf16>
    %cst_12 = arith.constant dense<0.000000e+00> : vector<8x128xf32>
    %14 = tpu.matmul %13, %12, %cst_12 {dimension_numbers = #tpu.dot_dimension_numbers<[1], [0], [0], [1], [0, 0, 1, 1], [], []>} : vector<8x128xbf16>, vector<128x128xbf16>, vector<8x128xf32> -> vector<8x128xf32>
    %15 = vector.broadcast %2 : vector<1x128xf32> to vector<8x128xf32>
    %16 = arith.addf %14, %15 : vector<8x128xf32>
    %cst_13 = arith.constant 0.000000e+00 : f32
    %17 = vector.broadcast %cst_13 : f32 to vector<8x128xf32>
    %18 = arith.maximumf %16, %17 : vector<8x128xf32>
    %19 = arith.truncf %18 : vector<8x128xf32> to vector<8x128xbf16>
    %c0_14 = arith.constant 0 : index
    %c0_15 = arith.constant 0 : index
    %20 = vector.load %arg6[%c0_14, %c0_15] : memref<160x128xbf16, #tpu.memory_space<vmem>>, vector<128x128xbf16>
    %cst_16 = arith.constant dense<0.000000e+00> : vector<8x128xf32>
    %21 = tpu.matmul %19, %20, %cst_16 {dimension_numbers = #tpu.dot_dimension_numbers<[1], [0], [0], [1], [0, 0, 1, 1], [], []>} : vector<8x128xbf16>, vector<128x128xbf16>, vector<8x128xf32> -> vector<8x128xf32>
    %c0_17 = arith.constant 0 : index
    %c0_18 = arith.constant 0 : index
    %22 = vector.load %arg7[%c0_17, %c0_18] : memref<1x128xf32, #tpu.memory_space<vmem>>, vector<1x128xf32>
    %23 = vector.broadcast %22 : vector<1x128xf32> to vector<8x128xf32>
    %24 = arith.addf %21, %23 : vector<8x128xf32>
    %cst_19 = arith.constant 0.000000e+00 : f32
    %25 = vector.broadcast %cst_19 : f32 to vector<8x128xf32>
    %26 = arith.maximumf %24, %25 : vector<8x128xf32>
    %27 = arith.negf %26 : vector<8x128xf32>
    %28 = math.exp %27 : vector<8x128xf32>
    %cst_20 = arith.constant 1.000000e+00 : f32
    %29 = vector.broadcast %cst_20 : f32 to vector<8x128xf32>
    %30 = arith.addf %29, %28 : vector<8x128xf32>
    %31 = arith.divf %29, %30 : vector<8x128xf32>
    %c0_21 = arith.constant 0 : index
    %c0_22 = arith.constant 0 : index
    %32 = vector.load %arg3[%c0_21, %c0_22] : memref<8x128xf32, #tpu.memory_space<vmem>>, vector<8x128xf32>
    %33 = arith.mulf %32, %31 : vector<8x128xf32>
    %cst_23 = arith.constant dense<0.000000e+00> : vector<8xf32>
    %34 = vector.multi_reduction <add>, %33, %cst_23 [1] : vector<8x128xf32> to vector<8xf32>
    %35 = vector.shape_cast %34 : vector<8xf32> to vector<8x1xf32>
    %36 = arith.negf %35 : vector<8x1xf32>
    %37 = math.exp %36 : vector<8x1xf32>
    %cst_24 = arith.constant 1.000000e+00 : f32
    %38 = vector.broadcast %cst_24 : f32 to vector<8x1xf32>
    %39 = arith.addf %38, %37 : vector<8x1xf32>
    %40 = arith.divf %38, %39 : vector<8x1xf32>
    %c0_25 = arith.constant 0 : index
    %c0_26 = arith.constant 0 : index
    %41 = vector.load %arg8[%c0_25, %c0_26] : memref<8x1xf32, #tpu.memory_space<vmem>>, vector<8x1xf32>
    tpu.vector_store %arg8[%c0_25, %c0_26], %40 {strides = array<i32>} : memref<8x1xf32, #tpu.memory_space<vmem>>, vector<8x1xf32>,
    %42 = arith.subf %32, %31 : vector<8x128xf32>
    %43 = tpu.iota {dimensions = array<i32: 1>} : vector<8x128xi32>
    %c32_i32 = arith.constant 32 : i32
    %44 = vector.broadcast %c32_i32 : i32 to vector<8x128xi32>
    %45 = arith.cmpi slt, %43, %44 : vector<8x128xi32>
    %cst_27 = arith.constant 0.000000e+00 : f32
    %46 = vector.broadcast %cst_27 : f32 to vector<8x128xf32>
    %47 = arith.select %45, %42, %46 : vector<8x128xi1>, vector<8x128xf32>
    %48 = arith.mulf %47, %47 : vector<8x128xf32>
    %cst_28 = arith.constant dense<0.000000e+00> : vector<8xf32>
    %49 = vector.multi_reduction <add>, %48, %cst_28 [1] : vector<8x128xf32> to vector<8xf32>
    %50 = vector.shape_cast %49 : vector<8xf32> to vector<8x1xf32>
    %cst_29 = arith.constant 3.125000e-02 : f32
    %51 = vector.broadcast %cst_29 : f32 to vector<8x1xf32>
    %52 = arith.mulf %50, %51 : vector<8x1xf32>
    %53 = math.sqrt %52 : vector<8x1xf32>
    %c0_30 = arith.constant 0 : index
    %c0_31 = arith.constant 0 : index
    %54 = vector.load %arg9[%c0_30, %c0_31] : memref<8x1xf32, #tpu.memory_space<vmem>>, vector<8x1xf32>
    tpu.vector_store %arg9[%c0_30, %c0_31], %53 {strides = array<i32>} : memref<8x1xf32, #tpu.memory_space<vmem>>, vector<8x1xf32>,
    return
  }
  func.func @transform_0(%arg0: i32) -> (i32, i32) {
    %c0_i32 = arith.constant 0 : i32
    %c0_i32_0 = arith.constant 0 : i32
    return %arg0, %c0_i32 : i32, i32
  }
  func.func @transform_1(%arg0: i32) -> (i32, i32) {
    %c0_i32 = arith.constant 0 : i32
    %c0_i32_0 = arith.constant 0 : i32
    return %arg0, %c0_i32 : i32, i32
  }
  func.func @transform_2(%arg0: i32) -> (i32, i32) {
    %c0_i32 = arith.constant 0 : i32
    %c0_i32_0 = arith.constant 0 : i32
    return %arg0, %c0_i32 : i32, i32
  }
  func.func @transform_3(%arg0: i32) -> (i32, i32) {
    %c0_i32 = arith.constant 0 : i32
    %c0_i32_0 = arith.constant 0 : i32
    %c0_i32_1 = arith.constant 0 : i32
    return %c0_i32, %c0_i32_0 : i32, i32
  }
  func.func @transform_4(%arg0: i32) -> (i32, i32) {
    %c0_i32 = arith.constant 0 : i32
    %c0_i32_0 = arith.constant 0 : i32
    %c0_i32_1 = arith.constant 0 : i32
    return %c0_i32, %c0_i32_0 : i32, i32
  }
  func.func @transform_5(%arg0: i32) -> (i32, i32) {
    %c0_i32 = arith.constant 0 : i32
    %c0_i32_0 = arith.constant 0 : i32
    %c0_i32_1 = arith.constant 0 : i32
    return %c0_i32, %c0_i32_0 : i32, i32
  }
  func.func @transform_6(%arg0: i32) -> (i32, i32) {
    %c0_i32 = arith.constant 0 : i32
    %c0_i32_0 = arith.constant 0 : i32
    %c0_i32_1 = arith.constant 0 : i32
    return %c0_i32, %c0_i32_0 : i32, i32
  }
  func.func @transform_7(%arg0: i32) -> (i32, i32) {
    %c0_i32 = arith.constant 0 : i32
    %c0_i32_0 = arith.constant 0 : i32
    return %arg0, %c0_i32 : i32, i32
  }
  func.func @transform_8(%arg0: i32) -> (i32, i32) {
    %c0_i32 = arith.constant 0 : i32
    %c0_i32_0 = arith.constant 0 : i32
    return %arg0, %c0_i32 : i32, i32
  }
}

</mosaic_0001>

<llo_original>
// kernel: tpu_custom_call.1
$region0: #{tpu_custom_call.1}
  #allocation0 [shape = 'u32[]', space=smem, size = 0x4, offset = 0x4, fixed_abs, tag = 'smem constant byte address 0x4 - core index']
  #allocation1 [shape = 'u32[144,128]{1,0:T(1,128)}', space=vmem, size = 0x12000, scoped, tag = 'internal scratch']
  %s0 = inlined_call_operand.hbm [shape: bf16[8,128], index: 0, kind: input, shape index: {}]
  %s1 = inlined_call_operand.hbm [shape: bf16[8,128], index: 1, kind: input, shape index: {}]
  %s2 = inlined_call_operand.hbm [shape: f32[8,128], index: 2, kind: input, shape index: {}]
  %s3 = inlined_call_operand.hbm [shape: bf16[160,128], index: 3, kind: input, shape index: {}]
  %s4 = inlined_call_operand.vmem [shape: f32[1,128], index: 4, kind: input, shape index: {}]
  %s5 = inlined_call_operand.hbm [shape: bf16[160,128], index: 5, kind: input, shape index: {}]
  %s6 = inlined_call_operand.vmem [shape: f32[1,128], index: 6, kind: input, shape index: {}]
  %s7 = inlined_call_operand.vmem [shape: f32[8,1], index: 7, kind: output, shape index: {0}]
  %s8 = inlined_call_operand.vmem [shape: f32[8,1], index: 8, kind: output, shape index: {1}]
  %9 = xla_tuple %s7, %s8
  %s10 = sld [smem:[#allocation0]]
  $region66: #{tpu_custom_call.1} parent=0
    _
  %s12 = ssub.s32 1, %s10
  %s13 = scalar_select 0, %s12, %s10
  $region1: #{tpu_custom_call.1} parent=0
    #allocation2 [shape = 'u8[2048]{0}', space=vmem, size = 0x800, scoped, tag = 'input window, operand 0, single buffered']
    #allocation3 [shape = 's32[1]{0}', space=sflag, size = 0x4, scoped, tag = 'scoped memory for tpu_custom_call.1']
    #allocation4 [shape = 'u8[2048]{0}', space=vmem, size = 0x800, scoped, tag = 'input window, operand 1, single buffered']
    #allocation5 [shape = 's32[1]{0}', space=sflag, size = 0x4, scoped, tag = 'scoped memory for tpu_custom_call.1']
    #allocation6 [shape = 'u8[4096]{0}', space=vmem, size = 0x1000, scoped, tag = 'input window, operand 2, single buffered']
    #allocation7 [shape = 'u8[40960]{0}', space=vmem, size = 0xa000, scoped, tag = 'input window, operand 3, single buffered']
    #allocation8 [shape = 's32[1]{0}', space=sflag, size = 0x4, scoped, tag = 'scoped memory for tpu_custom_call.1']
    #allocation9 [shape = 'u8[40960]{0}', space=vmem, size = 0xa000, scoped, tag = 'input window, operand 5, single buffered']
    %14 = vsyncpa [#allocation3], 0
    %15 = vsyncpa [#allocation5], 0
    %16 = vsyncpa [#allocation8], 0
    // Predicated region
    $region2: #{tpu_custom_call.1} parent=1 // pred_check
      _
    $region3: #{tpu_custom_call.1} parent=1 // pred_check_branch
      %18 = sbr.rel (0) target = $region5
    $region4: #{tpu_custom_call.1} parent=1 // pred_region
      %s20 = ssub.s32 64, 64
      %21 = vsyncadd [#allocation3], %s20
      %s23 = sshll.u32 [#allocation2], 4
      %s24 = int_to_ptr.vmem [resolvable:$true] %s23
      %26 = dma.hbm_to_vmem [thread:$0]  %s0, 64, %s24, [#allocation3]
    $region5: #{tpu_custom_call.1} parent=1 // pred_fallthru
      _
    // Predicated region
    $region6: #{tpu_custom_call.1} parent=1 // pred_check
      _
    $region7: #{tpu_custom_call.1} parent=1 // pred_check_branch
      %28 = sbr.rel (0) target = $region9
    $region8: #{tpu_custom_call.1} parent=1 // pred_region
      %s30 = ssub.s32 64, 64
      %31 = vsyncadd [#allocation5], %s30
      %s33 = sshll.u32 [#allocation4], 4
      %s34 = int_to_ptr.vmem [resolvable:$true] %s33
      %36 = dma.hbm_to_vmem [thread:$0]  %s1, 64, %s34, [#allocation5]
    $region9: #{tpu_custom_call.1} parent=1 // pred_fallthru
      _
    // Predicated region
    $region10: #{tpu_custom_call.1} parent=1 // pred_check
      _
    $region11: #{tpu_custom_call.1} parent=1 // pred_check_branch
      %38 = sbr.rel (0) target = $region13
    $region12: #{tpu_custom_call.1} parent=1 // pred_region
      %s40 = ssub.s32 128, 128
      %41 = vsyncadd [#allocation5], %s40
      %s43 = sshll.u32 [#allocation6], 4
      %s44 = int_to_ptr.vmem [resolvable:$true] %s43
      %46 = dma.hbm_to_vmem [thread:$0]  %s2, 128, %s44, [#allocation5]
    $region13: #{tpu_custom_call.1} parent=1 // pred_fallthru
      _
    // Predicated region
    $region14: #{tpu_custom_call.1} parent=1 // pred_check
      _
    $region15: #{tpu_custom_call.1} parent=1 // pred_check_branch
      %48 = sbr.rel (0) target = $region17
    $region16: #{tpu_custom_call.1} parent=1 // pred_region
      %s50 = ssub.s32 1280, 1280
      %51 = vsyncadd [#allocation8], %s50
      %s52 = sshll.u32 [#allocation7], 4
      %s53 = int_to_ptr.vmem [resolvable:$true] %s52
      %58 = dma.hbm_to_vmem [thread:$0]  %s3, 1280, %s53, [#allocation8], 64, 64, 4
    $region17: #{tpu_custom_call.1} parent=1 // pred_fallthru
      _
    // Predicated region
    $region18: #{tpu_custom_call.1} parent=1 // pred_check
      _
    $region19: #{tpu_custom_call.1} parent=1 // pred_check_branch
      %60 = sbr.rel (0) target = $region21
    $region20: #{tpu_custom_call.1} parent=1 // pred_region
      _
    $region21: #{tpu_custom_call.1} parent=1 // pred_fallthru
      _
    // Predicated region
    $region22: #{tpu_custom_call.1} parent=1 // pred_check
      _
    $region23: #{tpu_custom_call.1} parent=1 // pred_check_branch
      %62 = sbr.rel (0) target = $region25
    $region24: #{tpu_custom_call.1} parent=1 // pred_region
      %s64 = ssub.s32 1280, 1280
      %65 = vsyncadd [#allocation8], %s64
      %s66 = sshll.u32 [#allocation9], 4
      %s67 = int_to_ptr.vmem [resolvable:$true] %s66
      %72 = dma.hbm_to_vmem [thread:$0]  %s5, 1280, %s67, [#allocation8], 64, 64, 4
    $region25: #{tpu_custom_call.1} parent=1 // pred_fallthru
      _
    // Predicated region
    $region26: #{tpu_custom_call.1} parent=1 // pred_check
      _
    $region27: #{tpu_custom_call.1} parent=1 // pred_check_branch
      %74 = sbr.rel (0) target = $region29
    $region28: #{tpu_custom_call.1} parent=1 // pred_region
      _
    $region29: #{tpu_custom_call.1} parent=1 // pred_fallthru
      _
    // Predicated region
    $region30: #{tpu_custom_call.1} parent=1 // pred_check
      _
    $region31: #{tpu_custom_call.1} parent=1 // pred_check_branch
      %76 = sbr.rel (0) target = $region33
    $region32: #{tpu_custom_call.1} parent=1 // pred_region
      %77 = dma.done [#allocation3], 64
    $region33: #{tpu_custom_call.1} parent=1 // pred_fallthru
      _
    // Predicated region
    $region34: #{tpu_custom_call.1} parent=1 // pred_check
      _
    $region35: #{tpu_custom_call.1} parent=1 // pred_check_branch
      %79 = sbr.rel (0) target = $region37
    $region36: #{tpu_custom_call.1} parent=1 // pred_region
      %80 = dma.done [#allocation5], 64
    $region37: #{tpu_custom_call.1} parent=1 // pred_fallthru
      _
    // Predicated region
    $region38: #{tpu_custom_call.1} parent=1 // pred_check
      _
    $region39: #{tpu_custom_call.1} parent=1 // pred_check_branch
      %82 = sbr.rel (0) target = $region41
    $region40: #{tpu_custom_call.1} parent=1 // pred_region
      %83 = dma.done [#allocation5], 128
    $region41: #{tpu_custom_call.1} parent=1 // pred_fallthru
      _
    // Predicated region
    $region42: #{tpu_custom_call.1} parent=1 // pred_check
      _
    $region43: #{tpu_custom_call.1} parent=1 // pred_check_branch
      %85 = sbr.rel (0) target = $region45
    $region44: #{tpu_custom_call.1} parent=1 // pred_region
      %86 = dma.done [#allocation8], 1280
    $region45: #{tpu_custom_call.1} parent=1 // pred_fallthru
      _
    // Predicated region
    $region46: #{tpu_custom_call.1} parent=1 // pred_check
      _
    $region47: #{tpu_custom_call.1} parent=1 // pred_check_branch
      %88 = sbr.rel (0) target = $region49
    $region48: #{tpu_custom_call.1} parent=1 // pred_region
      %89 = dma.done [#allocation8], 1280
    $region49: #{tpu_custom_call.1} parent=1 // pred_fallthru
      _
    %v91 = vld [vmem:[#allocation2] sm:$0xf]
    %v92 = vld [vmem:[#allocation4] sm:$0xf]
    %v93 = vld [vmem:[%s4] sm:$0x1]
    %v94 = vld [vmem:[#allocation7] sm:$0xf]
    %v95 = vld [vmem:[#allocation7 + $0x4] sm:$0xf]
    %v96 = vld [vmem:[#allocation7 + $0x8] sm:$0xf]
    %v97 = vld [vmem:[#allocation7 + $0xc] sm:$0xf]
    %v98 = vld [vmem:[#allocation7 + $0x10] sm:$0xf]
    %v99 = vld [vmem:[#allocation7 + $0x14] sm:$0xf]
    %v100 = vld [vmem:[#allocation7 + $0x18] sm:$0xf]
    %v101 = vld [vmem:[#allocation7 + $0x1c] sm:$0xf]
    %v102 = vld [vmem:[#allocation7 + $0x20] sm:$0xf]
    %v103 = vld [vmem:[#allocation7 + $0x24] sm:$0xf]
    %v104 = vld [vmem:[#allocation7 + $0x28] sm:$0xf]
    %v105 = vld [vmem:[#allocation7 + $0x2c] sm:$0xf]
    %v106 = vld [vmem:[#allocation7 + $0x30] sm:$0xf]
    %v107 = vld [vmem:[#allocation7 + $0x34] sm:$0xf]
    %v108 = vld [vmem:[#allocation7 + $0x38] sm:$0xf]
    %v109 = vld [vmem:[#allocation7 + $0x3c] sm:$0xf]
    %v110 = vld [vmem:[#allocation7 + $0x10] sm:$0xf]
    %v111 = vld [vmem:[#allocation7 + $0x14] sm:$0xf]
    %v112 = vld [vmem:[#allocation7 + $0x18] sm:$0xf]
    %v113 = vld [vmem:[#allocation7 + $0x1c] sm:$0xf]
    %v114 = vld [vmem:[#allocation7 + $0x20] sm:$0xf]
    %v115 = vld [vmem:[#allocation7 + $0x24] sm:$0xf]
    %v116 = vld [vmem:[#allocation7 + $0x28] sm:$0xf]
    %v117 = vld [vmem:[#allocation7 + $0x2c] sm:$0xf]
    %v118 = vld [vmem:[#allocation7 + $0x30] sm:$0xf]
    %v119 = vld [vmem:[#allocation7 + $0x34] sm:$0xf]
    %v120 = vld [vmem:[#allocation7 + $0x38] sm:$0xf]
    %v121 = vld [vmem:[#allocation7 + $0x3c] sm:$0xf]
    %v122 = vld [vmem:[#allocation7 + $0x40] sm:$0xf]
    %v123 = vld [vmem:[#allocation7 + $0x44] sm:$0xf]
    %v124 = vld [vmem:[#allocation7 + $0x48] sm:$0xf]
    %v125 = vld [vmem:[#allocation7 + $0x4c] sm:$0xf]
    %v142 = vunpack.c.l.b16 %v110
    %v143 = vunpack.c.l.b16 %v111
    %v144 = vunpack.c.l.b16 %v112
    %v145 = vunpack.c.l.b16 %v113
    %v146 = vunpack.c.l.b16 %v114
    %v147 = vunpack.c.l.b16 %v115
    %v148 = vunpack.c.l.b16 %v116
    %v149 = vunpack.c.l.b16 %v117
    %v150 = vunpack.c.l.b16 %v118
    %v151 = vunpack.c.l.b16 %v119
    %v152 = vunpack.c.l.b16 %v120
    %v153 = vunpack.c.l.b16 %v121
    %v154 = vunpack.c.l.b16 %v122
    %v155 = vunpack.c.l.b16 %v123
    %v156 = vunpack.c.l.b16 %v124
    %v157 = vunpack.c.l.b16 %v125
    %v158 = vpack.c.b16 %v143, %v142
    %v159 = vpack.c.b16 %v145, %v144
    %v160 = vpack.c.b16 %v147, %v146
    %v161 = vpack.c.b16 %v149, %v148
    %v162 = vpack.c.b16 %v151, %v150
    %v163 = vpack.c.b16 %v153, %v152
    %v164 = vpack.c.b16 %v155, %v154
    %v165 = vpack.c.b16 %v157, %v156
    %174 = vmatprep.subr.bf16.mxu0 0
    %175 = vmatpush1.bf16.msra.mxu0 %v165
    %176 = vmatprep.subr.bf16.mxu0 0
    %177 = vmatpush1.bf16.msra.mxu0 %v164
    %178 = vmatprep.subr.bf16.mxu0 0
    %179 = vmatpush1.bf16.msra.mxu0 %v163
    %180 = vmatprep.subr.bf16.mxu0 0
    %181 = vmatpush1.bf16.msra.mxu0 %v162
    %182 = vmatprep.subr.bf16.mxu0 0
    %183 = vmatpush1.bf16.msra.mxu0 %v161
    %184 = vmatprep.subr.bf16.mxu0 0
    %185 = vmatpush1.bf16.msra.mxu0 %v160
    %186 = vmatprep.subr.bf16.mxu0 0
    %187 = vmatpush1.bf16.msra.mxu0 %v159
    %188 = vmatprep.subr.bf16.mxu0 0
    %189 = vmatpush1.bf16.msra.mxu0 %v158
    %190 = vmatprep.subr.bf16.mxu0 0
    %191 = vmatpush2.bf16.msra.mxu0 0
    %192 = vmatprep.subr.bf16.mxu0 0
    %193 = vmatpush2.bf16.msra.mxu0 0
    %194 = vmatprep.subr.bf16.mxu0 0
    %195 = vmatpush2.bf16.msra.mxu0 0
    %196 = vmatprep.subr.bf16.mxu0 0
    %197 = vmatpush2.bf16.msra.mxu0 0
    %198 = vmatprep.subr.bf16.mxu0 0
    %199 = vmatpush2.bf16.msra.mxu0 0
    %200 = vmatprep.subr.bf16.mxu0 0
    %201 = vmatpush2.bf16.msra.mxu0 0
    %202 = vmatprep.subr.bf16.mxu0 0
    %203 = vmatpush2.bf16.msra.mxu0 0
    %204 = vmatprep.subr.bf16.mxu0 0
    %205 = vmatpush2.bf16.msra.mxu0 0
    %206 = vmatprep.mubr.bf16.mxu0 0
    %207 = vmatmul.mubr.bf16.gmra.mxu0 %v92
    %v208 = vpop.f32.mrf.mxu0
    %v209 = vadd.f32 0.0, %v208
    %v210 = vpop.f32.mrf.mxu0
    %v211 = vpop.f32.mrf.mxu0
    %v212 = vpop.f32.mrf.mxu0
    %213 = vdwg.mxu0
    %v230 = vunpack.c.l.b16 %v94
    %v231 = vunpack.c.l.b16 %v95
    %v232 = vunpack.c.l.b16 %v96
    %v233 = vunpack.c.l.b16 %v97
    %v234 = vunpack.c.l.b16 %v98
    %v235 = vunpack.c.l.b16 %v99
    %v236 = vunpack.c.l.b16 %v100
    %v237 = vunpack.c.l.b16 %v101
    %v238 = vunpack.c.l.b16 %v102
    %v239 = vunpack.c.l.b16 %v103
    %v240 = vunpack.c.l.b16 %v104
    %v241 = vunpack.c.l.b16 %v105
    %v242 = vunpack.c.l.b16 %v106
    %v243 = vunpack.c.l.b16 %v107
    %v244 = vunpack.c.l.b16 %v108
    %v245 = vunpack.c.l.b16 %v109
    %v246 = vpack.c.b16 %v231, %v230
    %v247 = vpack.c.b16 %v233, %v232
    %v248 = vpack.c.b16 %v235, %v234
    %v249 = vpack.c.b16 %v237, %v236
    %v250 = vpack.c.b16 %v239, %v238
    %v251 = vpack.c.b16 %v241, %v240
    %v252 = vpack.c.b16 %v243, %v242
    %v253 = vpack.c.b16 %v245, %v244
    %262 = vmatprep.subr.bf16.mxu0 0
    %263 = vmatpush1.bf16.msra.mxu0 %v253
    %264 = vmatprep.subr.bf16.mxu0 0
    %265 = vmatpush1.bf16.msra.mxu0 %v252
    %266 = vmatprep.subr.bf16.mxu0 0
    %267 = vmatpush1.bf16.msra.mxu0 %v251
    %268 = vmatprep.subr.bf16.mxu0 0
    %269 = vmatpush1.bf16.msra.mxu0 %v250
    %270 = vmatprep.subr.bf16.mxu0 0
    %271 = vmatpush1.bf16.msra.mxu0 %v249
    %272 = vmatprep.subr.bf16.mxu0 0
    %273 = vmatpush1.bf16.msra.mxu0 %v248
    %274 = vmatprep.subr.bf16.mxu0 0
    %275 = vmatpush1.bf16.msra.mxu0 %v247
    %276 = vmatprep.subr.bf16.mxu0 0
    %277 = vmatpush1.bf16.msra.mxu0 %v246
    %278 = vmatprep.subr.bf16.mxu0 0
    %279 = vmatpush2.bf16.msra.mxu0 0
    %280 = vmatprep.subr.bf16.mxu0 0
    %281 = vmatpush2.bf16.msra.mxu0 0
    %282 = vmatprep.subr.bf16.mxu0 0
    %283 = vmatpush2.bf16.msra.mxu0 0
    %284 = vmatprep.subr.bf16.mxu0 0
    %285 = vmatpush2.bf16.msra.mxu0 0
    %286 = vmatprep.subr.bf16.mxu0 0
    %287 = vmatpush2.bf16.msra.mxu0 0
    %288 = vmatprep.subr.bf16.mxu0 0
    %289 = vmatpush2.bf16.msra.mxu0 0
    %290 = vmatprep.subr.bf16.mxu0 0
    %291 = vmatpush2.bf16.msra.mxu0 0
    %292 = vmatprep.subr.bf16.mxu0 0
    %293 = vmatpush2.bf16.msra.mxu0 0
    %294 = vmatprep.mubr.bf16.mxu0 0
    %295 = vmatmul.mubr.bf16.gmra.mxu0 %v91
    %v296 = vpop.f32.mrf.mxu0
    %v297 = vadd.f32 %v209, %v296
    %v298 = vpop.f32.mrf.mxu0
    %v299 = vpop.f32.mrf.mxu0
    %v300 = vpop.f32.mrf.mxu0
    %301 = vdwg.mxu0
    %v303 = vlaneseq
    %v304 = vshrl.u32 %v303, 7
    %v305 = vsub.s32 0, %v304
    %v306 = vrot.slane %v93, %v305
    %v308 = vadd.f32 %v297, %v306
    %v309 = vmax.f32 %v308, 0.0
    %v310 = vpack.c.bf16 %v309, %v309
    %311 = vmatprep.subr.bf16.mxu0 0
    %312 = vmatpush1.bf16.msra.mxu0 %v253
    %313 = vmatprep.subr.bf16.mxu0 0
    %314 = vmatpush1.bf16.msra.mxu0 %v252
    %315 = vmatprep.subr.bf16.mxu0 0
    %316 = vmatpush1.bf16.msra.mxu0 %v251
    %317 = vmatprep.subr.bf16.mxu0 0
    %318 = vmatpush1.bf16.msra.mxu0 %v250
    %319 = vmatprep.subr.bf16.mxu0 0
    %320 = vmatpush1.bf16.msra.mxu0 %v249
    %321 = vmatprep.subr.bf16.mxu0 0
    %322 = vmatpush1.bf16.msra.mxu0 %v248
    %323 = vmatprep.subr.bf16.mxu0 0
    %324 = vmatpush1.bf16.msra.mxu0 %v247
    %325 = vmatprep.subr.bf16.mxu0 0
    %326 = vmatpush1.bf16.msra.mxu0 %v246
    %327 = vmatprep.subr.bf16.mxu0 0
    %328 = vmatpush2.bf16.msra.mxu0 0
    %329 = vmatprep.subr.bf16.mxu0 0
    %330 = vmatpush2.bf16.msra.mxu0 0
    %331 = vmatprep.subr.bf16.mxu0 0
    %332 = vmatpush2.bf16.msra.mxu0 0
    %333 = vmatprep.subr.bf16.mxu0 0
    %334 = vmatpush2.bf16.msra.mxu0 0
    %335 = vmatprep.subr.bf16.mxu0 0
    %336 = vmatpush2.bf16.msra.mxu0 0
    %337 = vmatprep.subr.bf16.mxu0 0
    %338 = vmatpush2.bf16.msra.mxu0 0
    %339 = vmatprep.subr.bf16.mxu0 0
    %340 = vmatpush2.bf16.msra.mxu0 0
    %341 = vmatprep.subr.bf16.mxu0 0
    %342 = vmatpush2.bf16.msra.mxu0 0
    %343 = vmatprep.mubr.bf16.mxu0 0
    %344 = vmatmul.mubr.bf16.gmra.mxu0 %v310
    %v345 = vpop.f32.mrf.mxu0
    %v346 = vadd.f32 %v306, %v345
    %v347 = vpop.f32.mrf.mxu0
    %v348 = vpop.f32.mrf.mxu0
    %v349 = vpop.f32.mrf.mxu0
    %350 = vdwg.mxu0
    %v351 = vmax.f32 %v346, 0.0
    %v352 = vpack.c.bf16 %v351, %v351
    %v353 = vld [vmem:[#allocation9] sm:$0xf]
    %v354 = vld [vmem:[#allocation9 + $0x4] sm:$0xf]
    %v355 = vld [vmem:[#allocation9 + $0x8] sm:$0xf]
    %v356 = vld [vmem:[#allocation9 + $0xc] sm:$0xf]
    %v357 = vld [vmem:[#allocation9 + $0x10] sm:$0xf]
    %v358 = vld [vmem:[#allocation9 + $0x14] sm:$0xf]
    %v359 = vld [vmem:[#allocation9 + $0x18] sm:$0xf]
    %v360 = vld [vmem:[#allocation9 + $0x1c] sm:$0xf]
    %v361 = vld [vmem:[#allocation9 + $0x20] sm:$0xf]
    %v362 = vld [vmem:[#allocation9 + $0x24] sm:$0xf]
    %v363 = vld [vmem:[#allocation9 + $0x28] sm:$0xf]
    %v364 = vld [vmem:[#allocation9 + $0x2c] sm:$0xf]
    %v365 = vld [vmem:[#allocation9 + $0x30] sm:$0xf]
    %v366 = vld [vmem:[#allocation9 + $0x34] sm:$0xf]
    %v367 = vld [vmem:[#allocation9 + $0x38] sm:$0xf]
    %v368 = vld [vmem:[#allocation9 + $0x3c] sm:$0xf]
    %v369 = vld [vmem:[%s6] sm:$0x1]
    %v371 = vlaneseq
    %v372 = vshrl.u32 %v371, 7
    %v373 = vsub.s32 0, %v372
    %v374 = vrot.slane %v369, %v373
    %v392 = vunpack.c.l.b16 %v353
    %v393 = vunpack.c.l.b16 %v354
    %v394 = vunpack.c.l.b16 %v355
    %v395 = vunpack.c.l.b16 %v356
    %v396 = vunpack.c.l.b16 %v357
    %v397 = vunpack.c.l.b16 %v358
    %v398 = vunpack.c.l.b16 %v359
    %v399 = vunpack.c.l.b16 %v360
    %v400 = vunpack.c.l.b16 %v361
    %v401 = vunpack.c.l.b16 %v362
    %v402 = vunpack.c.l.b16 %v363
    %v403 = vunpack.c.l.b16 %v364
    %v404 = vunpack.c.l.b16 %v365
    %v405 = vunpack.c.l.b16 %v366
    %v406 = vunpack.c.l.b16 %v367
    %v407 = vunpack.c.l.b16 %v368
    %v408 = vpack.c.b16 %v393, %v392
    %v409 = vpack.c.b16 %v395, %v394
    %v410 = vpack.c.b16 %v397, %v396
    %v411 = vpack.c.b16 %v399, %v398
    %v412 = vpack.c.b16 %v401, %v400
    %v413 = vpack.c.b16 %v403, %v402
    %v414 = vpack.c.b16 %v405, %v404
    %v415 = vpack.c.b16 %v407, %v406
    %424 = vmatprep.subr.bf16.mxu0 0
    %425 = vmatpush1.bf16.msra.mxu0 %v415
    %426 = vmatprep.subr.bf16.mxu0 0
    %427 = vmatpush1.bf16.msra.mxu0 %v414
    %428 = vmatprep.subr.bf16.mxu0 0
    %429 = vmatpush1.bf16.msra.mxu0 %v413
    %430 = vmatprep.subr.bf16.mxu0 0
    %431 = vmatpush1.bf16.msra.mxu0 %v412
    %432 = vmatprep.subr.bf16.mxu0 0
    %433 = vmatpush1.bf16.msra.mxu0 %v411
    %434 = vmatprep.subr.bf16.mxu0 0
    %435 = vmatpush1.bf16.msra.mxu0 %v410
    %436 = vmatprep.subr.bf16.mxu0 0
    %437 = vmatpush1.bf16.msra.mxu0 %v409
    %438 = vmatprep.subr.bf16.mxu0 0
    %439 = vmatpush1.bf16.msra.mxu0 %v408
    %440 = vmatprep.subr.bf16.mxu0 0
    %441 = vmatpush2.bf16.msra.mxu0 0
    %442 = vmatprep.subr.bf16.mxu0 0
    %443 = vmatpush2.bf16.msra.mxu0 0
    %444 = vmatprep.subr.bf16.mxu0 0
    %445 = vmatpush2.bf16.msra.mxu0 0
    %446 = vmatprep.subr.bf16.mxu0 0
    %447 = vmatpush2.bf16.msra.mxu0 0
    %448 = vmatprep.subr.bf16.mxu0 0
    %449 = vmatpush2.bf16.msra.mxu0 0
    %450 = vmatprep.subr.bf16.mxu0 0
    %451 = vmatpush2.bf16.msra.mxu0 0
    %452 = vmatprep.subr.bf16.mxu0 0
    %453 = vmatpush2.bf16.msra.mxu0 0
    %454 = vmatprep.subr.bf16.mxu0 0
    %455 = vmatpush2.bf16.msra.mxu0 0
    %456 = vmatprep.mubr.bf16.mxu0 0
    %457 = vmatmul.mubr.bf16.gmra.mxu0 %v352
    %v458 = vpop.f32.mrf.mxu0
    %v459 = vadd.f32 %v374, %v458
    %v460 = vpop.f32.mrf.mxu0
    %v461 = vpop.f32.mrf.mxu0
    %v462 = vpop.f32.mrf.mxu0
    %463 = vdwg.mxu0
    %v464 = vmax.f32 %v459, 0.0
    %v465 = vxor.u32 %v464, 2147483648
    %v466 = vmul.f32 %v465, 1.442695
    %v467 = vpow.pop %v466
    %v468 = vadd.f32 %v467, 1.0
    %v469 = vrcp.pop %v468
    %v470 = vmul.f32 1.0, %v469
    %v471 = vld [vmem:[#allocation6] sm:$0xff]
    %v472 = vmul.f32 %v471, %v470
    %473 = vadd.xlane.f32.xlu0 %v472
    %v474 = vpop.xlane.xlu0 %473
    %v475 = vxor.u32 %v474, 2147483648
    %v476 = vmul.f32 %v475, 1.442695
    %v477 = vpow.pop %v476
    %v478 = vadd.f32 %v477, 1.0
    %v479 = vrcp.pop %v478
    %v480 = vmul.f32 1.0, %v479
    %vm481 = vcmask 7168
    %482 = vst.msk [vmem:[%s7] sm:$0xff] %vm481, %v480
    %v483 = vsub.f32 %v471, %v470
    %v484 = vlaneseq
    %v485 = vand.u32 %v484, 127
    %vm486 = vcmp.lt.s32.totalorder %v485, 32
    %v487 = vsel %vm486, %v483, 0.0
    %v488 = vmul.f32 %v487, %v487
    %489 = vadd.xlane.f32.xlu0 %v488
    %v490 = vpop.xlane.xlu0 %489
    %v491 = vmul.f32 %v490, 0.03125
    %v492 = vrsqrt.pop %v491
    %v493 = vmul.f32 %v491, %v492
    %vm494 = vcmp.eq.f32.partialorder %v491, inf
    %v495 = vsel %vm494, %v491, %v493
    %vm496 = vcmp.eq.f32.partialorder %v491, 0.0
    %v497 = vand.u32 %v491, 2147483648
    %v498 = vsel %vm496, %v497, %v495
    %499 = vst.msk [vmem:[%s8] sm:$0xff] %vm481, %v498
    // Predicated region
    $region50: #{tpu_custom_call.1} parent=1 // pred_check
      _
    $region51: #{tpu_custom_call.1} parent=1 // pred_check_branch
      %501 = sbr.rel (0) target = $region53
    $region52: #{tpu_custom_call.1} parent=1 // pred_region
      _
    $region53: #{tpu_custom_call.1} parent=1 // pred_fallthru
      _
    // Predicated region
    $region54: #{tpu_custom_call.1} parent=1 // pred_check
      _
    $region55: #{tpu_custom_call.1} parent=1 // pred_check_branch
      %503 = sbr.rel (0) target = $region57
    $region56: #{tpu_custom_call.1} parent=1 // pred_region
      _
    $region57: #{tpu_custom_call.1} parent=1 // pred_fallthru
      _
    // Predicated region
    $region58: #{tpu_custom_call.1} parent=1 // pred_check
      _
    $region59: #{tpu_custom_call.1} parent=1 // pred_check_branch
      %505 = sbr.rel (0) target = $region61
    $region60: #{tpu_custom_call.1} parent=1 // pred_region
      _
    $region61: #{tpu_custom_call.1} parent=1 // pred_fallthru
      _
    // Predicated region
    $region62: #{tpu_custom_call.1} parent=1 // pred_check
      _
    $region63: #{tpu_custom_call.1} parent=1 // pred_check_branch
      %507 = sbr.rel (0) target = $region65
    $region64: #{tpu_custom_call.1} parent=1 // pred_region
      _
    $region65: #{tpu_custom_call.1} parent=1 // pred_fallthru
      _
    %508 = vsyncpa [#allocation3], 1
    %509 = vsyncpa [#allocation5], 1
    %510 = vsyncpa [#allocation8], 1

// kernel: tpu_custom_call.1
$region0: #{tpu_custom_call.1}
  #allocation0 [shape = 'u32[]', space=smem, size = 0x4, offset = 0x4, fixed_abs, tag = 'smem constant byte address 0x4 - core index']
  #allocation1 [shape = 'u32[144,128]{1,0:T(1,128)}', space=vmem, size = 0x12000, scoped, tag = 'internal scratch']
  %s0 = inlined_call_operand.hbm [shape: bf16[8,128], index: 0, kind: input, shape index: {}]
  %s1 = inlined_call_operand.hbm [shape: bf16[8,128], index: 1, kind: input, shape index: {}]
  %s2 = inlined_call_operand.hbm [shape: f32[8,128], index: 2, kind: input, shape index: {}]
  %s3 = inlined_call_operand.hbm [shape: bf16[160,128], index: 3, kind: input, shape index: {}]
  %s4 = inlined_call_operand.vmem [shape: f32[1,128], index: 4, kind: input, shape index: {}]
  %s5 = inlined_call_operand.hbm [shape: bf16[160,128], index: 5, kind: input, shape index: {}]
  %s6 = inlined_call_operand.vmem [shape: f32[1,128], index: 6, kind: input, shape index: {}]
  %s7 = inlined_call_operand.vmem [shape: f32[8,1], index: 7, kind: output, shape index: {0}]
  %s8 = inlined_call_operand.vmem [shape: f32[8,1], index: 8, kind: output, shape index: {1}]
  %9 = xla_tuple %s7, %s8
  %s10 = sld [smem:[#allocation0]]
  $region66: #{tpu_custom_call.1} parent=0
    _
  %s12 = ssub.s32 1, %s10
  %s13 = scalar_select 0, %s12, %s10
  $region1: #{tpu_custom_call.1} parent=0
    #allocation2 [shape = 'u8[2048]{0}', space=vmem, size = 0x800, scoped, tag = 'input window, operand 0, single buffered']
    #allocation3 [shape = 's32[1]{0}', space=sflag, size = 0x4, scoped, tag = 'scoped memory for tpu_custom_call.1']
    #allocation4 [shape = 'u8[2048]{0}', space=vmem, size = 0x800, scoped, tag = 'input window, operand 1, single buffered']
    #allocation5 [shape = 's32[1]{0}', space=sflag, size = 0x4, scoped, tag = 'scoped memory for tpu_custom_call.1']
    #allocation6 [shape = 'u8[4096]{0}', space=vmem, size = 0x1000, scoped, tag = 'input window, operand 2, single buffered']
    #allocation7 [shape = 'u8[40960]{0}', space=vmem, size = 0xa000, scoped, tag = 'input window, operand 3, single buffered']
    #allocation8 [shape = 's32[1]{0}', space=sflag, size = 0x4, scoped, tag = 'scoped memory for tpu_custom_call.1']
    #allocation9 [shape = 'u8[40960]{0}', space=vmem, size = 0xa000, scoped, tag = 'input window, operand 5, single buffered']
    %14 = vsyncpa [#allocation3], 0
    %15 = vsyncpa [#allocation5], 0
    %16 = vsyncpa [#allocation8], 0
    // Predicated region
    $region2: #{tpu_custom_call.1} parent=1 // pred_check
      _
    $region3: #{tpu_custom_call.1} parent=1 // pred_check_branch
      %18 = sbr.rel (0) target = $region5
    $region4: #{tpu_custom_call.1} parent=1 // pred_region
      %s20 = ssub.s32 64, 64
      %21 = vsyncadd [#allocation3], %s20
      %s23 = sshll.u32 [#allocation2], 4
      %s24 = int_to_ptr.vmem [resolvable:$true] %s23
      %26 = dma.hbm_to_vmem [thread:$0]  %s0, 64, %s24, [#allocation3]
    $region5: #{tpu_custom_call.1} parent=1 // pred_fallthru
      _
    // Predicated region
    $region6: #{tpu_custom_call.1} parent=1 // pred_check
      _
    $region7: #{tpu_custom_call.1} parent=1 // pred_check_branch
      %28 = sbr.rel (0) target = $region9
    $region8: #{tpu_custom_call.1} parent=1 // pred_region
      %s30 = ssub.s32 64, 64
      %31 = vsyncadd [#allocation5], %s30
      %s33 = sshll.u32 [#allocation4], 4
      %s34 = int_to_ptr.vmem [resolvable:$true] %s33
      %36 = dma.hbm_to_vmem [thread:$0]  %s1, 64, %s34, [#allocation5]
    $region9: #{tpu_custom_call.1} parent=1 // pred_fallthru
      _
    // Predicated region
    $region10: #{tpu_custom_call.1} parent=1 // pred_check
      _
    $region11: #{tpu_custom_call.1} parent=1 // pred_check_branch
      %38 = sbr.rel (0) target = $region13
    $region12: #{tpu_custom_call.1} parent=1 // pred_region
      %s40 = ssub.s32 128, 128
      %41 = vsyncadd [#allocation5], %s40
      %s43 = sshll.u32 [#allocation6], 4
      %s44 = int_to_ptr.vmem [resolvable:$true] %s43
      %46 = dma.hbm_to_vmem [thread:$0]  %s2, 128, %s44, [#allocation5]
    $region13: #{tpu_custom_call.1} parent=1 // pred_fallthru
      _
    // Predicated region
    $region14: #{tpu_custom_call.1} parent=1 // pred_check
      _
    $region15: #{tpu_custom_call.1} parent=1 // pred_check_branch
      %48 = sbr.rel (0) target = $region17
    $region16: #{tpu_custom_call.1} parent=1 // pred_region
      %s50 = ssub.s32 1280, 1280
      %51 = vsyncadd [#allocation8], %s50
      %s52 = sshll.u32 [#allocation7], 4
      %s53 = int_to_ptr.vmem [resolvable:$true] %s52
      %58 = dma.hbm_to_vmem [thread:$0]  %s3, 1280, %s53, [#allocation8], 64, 64, 4
    $region17: #{tpu_custom_call.1} parent=1 // pred_fallthru
      _
    // Predicated region
    $region18: #{tpu_custom_call.1} parent=1 // pred_check
      _
    $region19: #{tpu_custom_call.1} parent=1 // pred_check_branch
      %60 = sbr.rel (0) target = $region21
    $region20: #{tpu_custom_call.1} parent=1 // pred_region
      _
    $region21: #{tpu_custom_call.1} parent=1 // pred_fallthru
      _
    // Predicated region
    $region22: #{tpu_custom_call.1} parent=1 // pred_check
      _
    $region23: #{tpu_custom_call.1} parent=1 // pred_check_branch
      %62 = sbr.rel (0) target = $region25
    $region24: #{tpu_custom_call.1} parent=1 // pred_region
      %s64 = ssub.s32 1280, 1280
      %65 = vsyncadd [#allocation8], %s64
      %s66 = sshll.u32 [#allocation9], 4
      %s67 = int_to_ptr.vmem [resolvable:$true] %s66
      %72 = dma.hbm_to_vmem [thread:$0]  %s5, 1280, %s67, [#allocation8], 64, 64, 4
    $region25: #{tpu_custom_call.1} parent=1 // pred_fallthru
      _
    // Predicated region
    $region26: #{tpu_custom_call.1} parent=1 // pred_check
      _
    $region27: #{tpu_custom_call.1} parent=1 // pred_check_branch
      %74 = sbr.rel (0) target = $region29
    $region28: #{tpu_custom_call.1} parent=1 // pred_region
      _
    $region29: #{tpu_custom_call.1} parent=1 // pred_fallthru
      _
    // Predicated region
    $region30: #{tpu_custom_call.1} parent=1 // pred_check
      _
    $region31: #{tpu_custom_call.1} parent=1 // pred_check_branch
      %76 = sbr.rel (0) target = $region33
    $region32: #{tpu_custom_call.1} parent=1 // pred_region
      %77 = dma.done [#allocation3], 64
    $region33: #{tpu_custom_call.1} parent=1 // pred_fallthru
      _
    // Predicated region
    $region34: #{tpu_custom_call.1} parent=1 // pred_check
      _
    $region35: #{tpu_custom_call.1} parent=1 // pred_check_branch
      %79 = sbr.rel (0) target = $region37
    $region36: #{tpu_custom_call.1} parent=1 // pred_region
      %80 = dma.done [#allocation5], 64
    $region37: #{tpu_custom_call.1} parent=1 // pred_fallthru
      _
    // Predicated region
    $region38: #{tpu_custom_call.1} parent=1 // pred_check
      _
    $region39: #{tpu_custom_call.1} parent=1 // pred_check_branch
      %82 = sbr.rel (0) target = $region41
    $region40: #{tpu_custom_call.1} parent=1 // pred_region
      %83 = dma.done [#allocation5], 128
    $region41: #{tpu_custom_call.1} parent=1 // pred_fallthru
      _
    // Predicated region
    $region42: #{tpu_custom_call.1} parent=1 // pred_check
      _
    $region43: #{tpu_custom_call.1} parent=1 // pred_check_branch
      %85 = sbr.rel (0) target = $region45
    $region44: #{tpu_custom_call.1} parent=1 // pred_region
      %86 = dma.done [#allocation8], 1280
    $region45: #{tpu_custom_call.1} parent=1 // pred_fallthru
      _
    // Predicated region
    $region46: #{tpu_custom_call.1} parent=1 // pred_check
      _
    $region47: #{tpu_custom_call.1} parent=1 // pred_check_branch
      %88 = sbr.rel (0) target = $region49
    $region48: #{tpu_custom_call.1} parent=1 // pred_region
      %89 = dma.done [#allocation8], 1280
    $region49: #{tpu_custom_call.1} parent=1 // pred_fallthru
      _
    %v91 = vld [vmem:[#allocation2] sm:$0xf]
    %v92 = vld [vmem:[#allocation4] sm:$0xf]
    %v93 = vld [vmem:[%s4] sm:$0x1]
    %v94 = vld [vmem:[#allocation7] sm:$0xf]
    %v95 = vld [vmem:[#allocation7 + $0x4] sm:$0xf]
    %v96 = vld [vmem:[#allocation7 + $0x8] sm:$0xf]
    %v97 = vld [vmem:[#allocation7 + $0xc] sm:$0xf]
    %v98 = vld [vmem:[#allocation7 + $0x10] sm:$0xf]
    %v99 = vld [vmem:[#allocation7 + $0x14] sm:$0xf]
    %v100 = vld [vmem:[#allocation7 + $0x18] sm:$0xf]
    %v101 = vld [vmem:[#allocation7 + $0x1c] sm:$0xf]
    %v102 = vld [vmem:[#allocation7 + $0x20] sm:$0xf]
    %v103 = vld [vmem:[#allocation7 + $0x24] sm:$0xf]
    %v104 = vld [vmem:[#allocation7 + $0x28] sm:$0xf]
    %v105 = vld [vmem:[#allocation7 + $0x2c] sm:$0xf]
    %v106 = vld [vmem:[#allocation7 + $0x30] sm:$0xf]
    %v107 = vld [vmem:[#allocation7 + $0x34] sm:$0xf]
    %v108 = vld [vmem:[#allocation7 + $0x38] sm:$0xf]
    %v109 = vld [vmem:[#allocation7 + $0x3c] sm:$0xf]
    %v110 = vld [vmem:[#allocation7 + $0x10] sm:$0xf]
    %v111 = vld [vmem:[#allocation7 + $0x14] sm:$0xf]
    %v112 = vld [vmem:[#allocation7 + $0x18] sm:$0xf]
    %v113 = vld [vmem:[#allocation7 + $0x1c] sm:$0xf]
    %v114 = vld [vmem:[#allocation7 + $0x20] sm:$0xf]
    %v115 = vld [vmem:[#allocation7 + $0x24] sm:$0xf]
    %v116 = vld [vmem:[#allocation7 + $0x28] sm:$0xf]
    %v117 = vld [vmem:[#allocation7 + $0x2c] sm:$0xf]
    %v118 = vld [vmem:[#allocation7 + $0x30] sm:$0xf]
    %v119 = vld [vmem:[#allocation7 + $0x34] sm:$0xf]
    %v120 = vld [vmem:[#allocation7 + $0x38] sm:$0xf]
    %v121 = vld [vmem:[#allocation7 + $0x3c] sm:$0xf]
    %v122 = vld [vmem:[#allocation7 + $0x40] sm:$0xf]
    %v123 = vld [vmem:[#allocation7 + $0x44] sm:$0xf]
    %v124 = vld [vmem:[#allocation7 + $0x48] sm:$0xf]
    %v125 = vld [vmem:[#allocation7 + $0x4c] sm:$0xf]
    %v142 = vunpack.c.l.b16 %v110
    %v143 = vunpack.c.l.b16 %v111
    %v144 = vunpack.c.l.b16 %v112
    %v145 = vunpack.c.l.b16 %v113
    %v146 = vunpack.c.l.b16 %v114
    %v147 = vunpack.c.l.b16 %v115
    %v148 = vunpack.c.l.b16 %v116
    %v149 = vunpack.c.l.b16 %v117
    %v150 = vunpack.c.l.b16 %v118
    %v151 = vunpack.c.l.b16 %v119
    %v152 = vunpack.c.l.b16 %v120
    %v153 = vunpack.c.l.b16 %v121
    %v154 = vunpack.c.l.b16 %v122
    %v155 = vunpack.c.l.b16 %v123
    %v156 = vunpack.c.l.b16 %v124
    %v157 = vunpack.c.l.b16 %v125
    %v158 = vpack.c.b16 %v143, %v142
    %v159 = vpack.c.b16 %v145, %v144
    %v160 = vpack.c.b16 %v147, %v146
    %v161 = vpack.c.b16 %v149, %v148
    %v162 = vpack.c.b16 %v151, %v150
    %v163 = vpack.c.b16 %v153, %v152
    %v164 = vpack.c.b16 %v155, %v154
    %v165 = vpack.c.b16 %v157, %v156
    %174 = vmatprep.subr.bf16.mxu0 0
    %175 = vmatpush1.bf16.msra.mxu0 %v165
    %176 = vmatprep.subr.bf16.mxu0 0
    %177 = vmatpush1.bf16.msra.mxu0 %v164
    %178 = vmatprep.subr.bf16.mxu0 0
    %179 = vmatpush1.bf16.msra.mxu0 %v163
    %180 = vmatprep.subr.bf16.mxu0 0
    %181 = vmatpush1.bf16.msra.mxu0 %v162
    %182 = vmatprep.subr.bf16.mxu0 0
    %183 = vmatpush1.bf16.msra.mxu0 %v161
    %184 = vmatprep.subr.bf16.mxu0 0
    %185 = vmatpush1.bf16.msra.mxu0 %v160
    %186 = vmatprep.subr.bf16.mxu0 0
    %187 = vmatpush1.bf16.msra.mxu0 %v159
    %188 = vmatprep.subr.bf16.mxu0 0
    %189 = vmatpush1.bf16.msra.mxu0 %v158
    %190 = vmatprep.subr.bf16.mxu0 0
    %191 = vmatpush2.bf16.msra.mxu0 0
    %192 = vmatprep.subr.bf16.mxu0 0
    %193 = vmatpush2.bf16.msra.mxu0 0
    %194 = vmatprep.subr.bf16.mxu0 0
    %195 = vmatpush2.bf16.msra.mxu0 0
    %196 = vmatprep.subr.bf16.mxu0 0
    %197 = vmatpush2.bf16.msra.mxu0 0
    %198 = vmatprep.subr.bf16.mxu0 0
    %199 = vmatpush2.bf16.msra.mxu0 0
    %200 = vmatprep.subr.bf16.mxu0 0
    %201 = vmatpush2.bf16.msra.mxu0 0
    %202 = vmatprep.subr.bf16.mxu0 0
    %203 = vmatpush2.bf16.msra.mxu0 0
    %204 = vmatprep.subr.bf16.mxu0 0
    %205 = vmatpush2.bf16.msra.mxu0 0
    %206 = vmatprep.mubr.bf16.mxu0 0
    %207 = vmatmul.mubr.bf16.gmra.mxu0 %v92
    %v208 = vpop.f32.mrf.mxu0
    %v209 = vadd.f32 0.0, %v208
    %v210 = vpop.f32.mrf.mxu0
    %v211 = vpop.f32.mrf.mxu0
    %v212 = vpop.f32.mrf.mxu0
    %213 = vdwg.mxu0
    %v230 = vunpack.c.l.b16 %v94
    %v231 = vunpack.c.l.b16 %v95
    %v232 = vunpack.c.l.b16 %v96
    %v233 = vunpack.c.l.b16 %v97
    %v234 = vunpack.c.l.b16 %v98
    %v235 = vunpack.c.l.b16 %v99
    %v236 = vunpack.c.l.b16 %v100
    %v237 = vunpack.c.l.b16 %v101
    %v238 = vunpack.c.l.b16 %v102
    %v239 = vunpack.c.l.b16 %v103
    %v240 = vunpack.c.l.b16 %v104
    %v241 = vunpack.c.l.b16 %v105
    %v242 = vunpack.c.l.b16 %v106
    %v243 = vunpack.c.l.b16 %v107
    %v244 = vunpack.c.l.b16 %v108
    %v245 = vunpack.c.l.b16 %v109
    %v246 = vpack.c.b16 %v231, %v230
    %v247 = vpack.c.b16 %v233, %v232
    %v248 = vpack.c.b16 %v235, %v234
    %v249 = vpack.c.b16 %v237, %v236
    %v250 = vpack.c.b16 %v239, %v238
    %v251 = vpack.c.b16 %v241, %v240
    %v252 = vpack.c.b16 %v243, %v242
    %v253 = vpack.c.b16 %v245, %v244
    %262 = vmatprep.subr.bf16.mxu0 0
    %263 = vmatpush1.bf16.msra.mxu0 %v253
    %264 = vmatprep.subr.bf16.mxu0 0
    %265 = vmatpush1.bf16.msra.mxu0 %v252
    %266 = vmatprep.subr.bf16.mxu0 0
    %267 = vmatpush1.bf16.msra.mxu0 %v251
    %268 = vmatprep.subr.bf16.mxu0 0
    %269 = vmatpush1.bf16.msra.mxu0 %v250
    %270 = vmatprep.subr.bf16.mxu0 0
    %271 = vmatpush1.bf16.msra.mxu0 %v249
    %272 = vmatprep.subr.bf16.mxu0 0
    %273 = vmatpush1.bf16.msra.mxu0 %v248
    %274 = vmatprep.subr.bf16.mxu0 0
    %275 = vmatpush1.bf16.msra.mxu0 %v247
    %276 = vmatprep.subr.bf16.mxu0 0
    %277 = vmatpush1.bf16.msra.mxu0 %v246
    %278 = vmatprep.subr.bf16.mxu0 0
    %279 = vmatpush2.bf16.msra.mxu0 0
    %280 = vmatprep.subr.bf16.mxu0 0
    %281 = vmatpush2.bf16.msra.mxu0 0
    %282 = vmatprep.subr.bf16.mxu0 0
    %283 = vmatpush2.bf16.msra.mxu0 0
    %284 = vmatprep.subr.bf16.mxu0 0
    %285 = vmatpush2.bf16.msra.mxu0 0
    %286 = vmatprep.subr.bf16.mxu0 0
    %287 = vmatpush2.bf16.msra.mxu0 0
    %288 = vmatprep.subr.bf16.mxu0 0
    %289 = vmatpush2.bf16.msra.mxu0 0
    %290 = vmatprep.subr.bf16.mxu0 0
    %291 = vmatpush2.bf16.msra.mxu0 0
    %292 = vmatprep.subr.bf16.mxu0 0
    %293 = vmatpush2.bf16.msra.mxu0 0
    %294 = vmatprep.mubr.bf16.mxu0 0
    %295 = vmatmul.mubr.bf16.gmra.mxu0 %v91
    %v296 = vpop.f32.mrf.mxu0
    %v297 = vadd.f32 %v209, %v296
    %v298 = vpop.f32.mrf.mxu0
    %v299 = vpop.f32.mrf.mxu0
    %v300 = vpop.f32.mrf.mxu0
    %301 = vdwg.mxu0
    %v303 = vlaneseq
    %v304 = vshrl.u32 %v303, 7
    %v305 = vsub.s32 0, %v304
    %v306 = vrot.slane %v93, %v305
    %v308 = vadd.f32 %v297, %v306
    %v309 = vmax.f32 %v308, 0.0
    %v310 = vpack.c.bf16 %v309, %v309
    %311 = vmatprep.subr.bf16.mxu0 0
    %312 = vmatpush1.bf16.msra.mxu0 %v253
    %313 = vmatprep.subr.bf16.mxu0 0
    %314 = vmatpush1.bf16.msra.mxu0 %v252
    %315 = vmatprep.subr.bf16.mxu0 0
    %316 = vmatpush1.bf16.msra.mxu0 %v251
    %317 = vmatprep.subr.bf16.mxu0 0
    %318 = vmatpush1.bf16.msra.mxu0 %v250
    %319 = vmatprep.subr.bf16.mxu0 0
    %320 = vmatpush1.bf16.msra.mxu0 %v249
    %321 = vmatprep.subr.bf16.mxu0 0
    %322 = vmatpush1.bf16.msra.mxu0 %v248
    %323 = vmatprep.subr.bf16.mxu0 0
    %324 = vmatpush1.bf16.msra.mxu0 %v247
    %325 = vmatprep.subr.bf16.mxu0 0
    %326 = vmatpush1.bf16.msra.mxu0 %v246
    %327 = vmatprep.subr.bf16.mxu0 0
    %328 = vmatpush2.bf16.msra.mxu0 0
    %329 = vmatprep.subr.bf16.mxu0 0
    %330 = vmatpush2.bf16.msra.mxu0 0
    %331 = vmatprep.subr.bf16.mxu0 0
    %332 = vmatpush2.bf16.msra.mxu0 0
    %333 = vmatprep.subr.bf16.mxu0 0
    %334 = vmatpush2.bf16.msra.mxu0 0
    %335 = vmatprep.subr.bf16.mxu0 0
    %336 = vmatpush2.bf16.msra.mxu0 0
    %337 = vmatprep.subr.bf16.mxu0 0
    %338 = vmatpush2.bf16.msra.mxu0 0
    %339 = vmatprep.subr.bf16.mxu0 0
    %340 = vmatpush2.bf16.msra.mxu0 0
    %341 = vmatprep.subr.bf16.mxu0 0
    %342 = vmatpush2.bf16.msra.mxu0 0
    %343 = vmatprep.mubr.bf16.mxu0 0
    %344 = vmatmul.mubr.bf16.gmra.mxu0 %v310
    %v345 = vpop.f32.mrf.mxu0
    %v346 = vadd.f32 %v306, %v345
    %v347 = vpop.f32.mrf.mxu0
    %v348 = vpop.f32.mrf.mxu0
    %v349 = vpop.f32.mrf.mxu0
    %350 = vdwg.mxu0
    %v351 = vmax.f32 %v346, 0.0
    %v352 = vpack.c.bf16 %v351, %v351
    %v353 = vld [vmem:[#allocation9] sm:$0xf]
    %v354 = vld [vmem:[#allocation9 + $0x4] sm:$0xf]
    %v355 = vld [vmem:[#allocation9 + $0x8] sm:$0xf]
    %v356 = vld [vmem:[#allocation9 + $0xc] sm:$0xf]
    %v357 = vld [vmem:[#allocation9 + $0x10] sm:$0xf]
    %v358 = vld [vmem:[#allocation9 + $0x14] sm:$0xf]
    %v359 = vld [vmem:[#allocation9 + $0x18] sm:$0xf]
    %v360 = vld [vmem:[#allocation9 + $0x1c] sm:$0xf]
    %v361 = vld [vmem:[#allocation9 + $0x20] sm:$0xf]
    %v362 = vld [vmem:[#allocation9 + $0x24] sm:$0xf]
    %v363 = vld [vmem:[#allocation9 + $0x28] sm:$0xf]
    %v364 = vld [vmem:[#allocation9 + $0x2c] sm:$0xf]
    %v365 = vld [vmem:[#allocation9 + $0x30] sm:$0xf]
    %v366 = vld [vmem:[#allocation9 + $0x34] sm:$0xf]
    %v367 = vld [vmem:[#allocation9 + $0x38] sm:$0xf]
    %v368 = vld [vmem:[#allocation9 + $0x3c] sm:$0xf]
    %v369 = vld [vmem:[%s6] sm:$0x1]
    %v371 = vlaneseq
    %v372 = vshrl.u32 %v371, 7
    %v373 = vsub.s32 0, %v372
    %v374 = vrot.slane %v369, %v373
    %v392 = vunpack.c.l.b16 %v353
    %v393 = vunpack.c.l.b16 %v354
    %v394 = vunpack.c.l.b16 %v355
    %v395 = vunpack.c.l.b16 %v356
    %v396 = vunpack.c.l.b16 %v357
    %v397 = vunpack.c.l.b16 %v358
    %v398 = vunpack.c.l.b16 %v359
    %v399 = vunpack.c.l.b16 %v360
    %v400 = vunpack.c.l.b16 %v361
    %v401 = vunpack.c.l.b16 %v362
    %v402 = vunpack.c.l.b16 %v363
    %v403 = vunpack.c.l.b16 %v364
    %v404 = vunpack.c.l.b16 %v365
    %v405 = vunpack.c.l.b16 %v366
    %v406 = vunpack.c.l.b16 %v367
    %v407 = vunpack.c.l.b16 %v368
    %v408 = vpack.c.b16 %v393, %v392
    %v409 = vpack.c.b16 %v395, %v394
    %v410 = vpack.c.b16 %v397, %v396
    %v411 = vpack.c.b16 %v399, %v398
    %v412 = vpack.c.b16 %v401, %v400
    %v413 = vpack.c.b16 %v403, %v402
    %v414 = vpack.c.b16 %v405, %v404
    %v415 = vpack.c.b16 %v407, %v406
    %424 = vmatprep.subr.bf16.mxu0 0
    %425 = vmatpush1.bf16.msra.mxu0 %v415
    %426 = vmatprep.subr.bf16.mxu0 0
    %427 = vmatpush1.bf16.msra.mxu0 %v414
    %428 = vmatprep.subr.bf16.mxu0 0
    %429 = vmatpush1.bf16.msra.mxu0 %v413
    %430 = vmatprep.subr.bf16.mxu0 0
    %431 = vmatpush1.bf16.msra.mxu0 %v412
    %432 = vmatprep.subr.bf16.mxu0 0
    %433 = vmatpush1.bf16.msra.mxu0 %v411
    %434 = vmatprep.subr.bf16.mxu0 0
    %435 = vmatpush1.bf16.msra.mxu0 %v410
    %436 = vmatprep.subr.bf16.mxu0 0
    %437 = vmatpush1.bf16.msra.mxu0 %v409
    %438 = vmatprep.subr.bf16.mxu0 0
    %439 = vmatpush1.bf16.msra.mxu0 %v408
    %440 = vmatprep.subr.bf16.mxu0 0
    %441 = vmatpush2.bf16.msra.mxu0 0
    %442 = vmatprep.subr.bf16.mxu0 0
    %443 = vmatpush2.bf16.msra.mxu0 0
    %444 = vmatprep.subr.bf16.mxu0 0
    %445 = vmatpush2.bf16.msra.mxu0 0
    %446 = vmatprep.subr.bf16.mxu0 0
    %447 = vmatpush2.bf16.msra.mxu0 0
    %448 = vmatprep.subr.bf16.mxu0 0
    %449 = vmatpush2.bf16.msra.mxu0 0
    %450 = vmatprep.subr.bf16.mxu0 0
    %451 = vmatpush2.bf16.msra.mxu0 0
    %452 = vmatprep.subr.bf16.mxu0 0
    %453 = vmatpush2.bf16.msra.mxu0 0
    %454 = vmatprep.subr.bf16.mxu0 0
    %455 = vmatpush2.bf16.msra.mxu0 0
    %456 = vmatprep.mubr.bf16.mxu0 0
    %457 = vmatmul.mubr.bf16.gmra.mxu0 %v352
    %v458 = vpop.f32.mrf.mxu0
    %v459 = vadd.f32 %v374, %v458
    %v460 = vpop.f32.mrf.mxu0
    %v461 = vpop.f32.mrf.mxu0
    %v462 = vpop.f32.mrf.mxu0
    %463 = vdwg.mxu0
    %v464 = vmax.f32 %v459, 0.0
    %v465 = vxor.u32 %v464, 2147483648
    %v466 = vmul.f32 %v465, 1.442695
    %v467 = vpow.pop %v466
    %v468 = vadd.f32 %v467, 1.0
    %v469 = vrcp.pop %v468
    %v470 = vmul.f32 1.0, %v469
    %v471 = vld [vmem:[#allocation6] sm:$0xff]
    %v472 = vmul.f32 %v471, %v470
    %473 = vadd.xlane.f32.xlu0 %v472
    %v474 = vpop.xlane.xlu0 %473
    %v475 = vxor.u32 %v474, 2147483648
    %v476 = vmul.f32 %v475, 1.442695
    %v477 = vpow.pop %v476
    %v478 = vadd.f32 %v477, 1.0
    %v479 = vrcp.pop %v478
    %v480 = vmul.f32 1.0, %v479
    %vm481 = vcmask 7168
    %482 = vst.msk [vmem:[%s7] sm:$0xff] %vm481, %v480
    %v483 = vsub.f32 %v471, %v470
    %v484 = vlaneseq
    %v485 = vand.u32 %v484, 127
    %vm486 = vcmp.lt.s32.totalorder %v485, 32
    %v487 = vsel %vm486, %v483, 0.0
    %v488 = vmul.f32 %v487, %v487
    %489 = vadd.xlane.f32.xlu0 %v488
    %v490 = vpop.xlane.xlu0 %489
    %v491 = vmul.f32 %v490, 0.03125
    %v492 = vrsqrt.pop %v491
    %v493 = vmul.f32 %v491, %v492
    %vm494 = vcmp.eq.f32.partialorder %v491, inf
    %v495 = vsel %vm494, %v491, %v493
    %vm496 = vcmp.eq.f32.partialorder %v491, 0.0
    %v497 = vand.u32 %v491, 2147483648
    %v498 = vsel %vm496, %v497, %v495
    %499 = vst.msk [vmem:[%s8] sm:$0xff] %vm481, %v498
    // Predicated region
    $region50: #{tpu_custom_call.1} parent=1 // pred_check
      _
    $region51: #{tpu_custom_call.1} parent=1 // pred_check_branch
      %501 = sbr.rel (0) target = $region53
    $region52: #{tpu_custom_call.1} parent=1 // pred_region
      _
    $region53: #{tpu_custom_call.1} parent=1 // pred_fallthru
      _
    // Predicated region
    $region54: #{tpu_custom_call.1} parent=1 // pred_check
      _
    $region55: #{tpu_custom_call.1} parent=1 // pred_check_branch
      %503 = sbr.rel (0) target = $region57
    $region56: #{tpu_custom_call.1} parent=1 // pred_region
      _
    $region57: #{tpu_custom_call.1} parent=1 // pred_fallthru
      _
    // Predicated region
    $region58: #{tpu_custom_call.1} parent=1 // pred_check
      _
    $region59: #{tpu_custom_call.1} parent=1 // pred_check_branch
      %505 = sbr.rel (0) target = $region61
    $region60: #{tpu_custom_call.1} parent=1 // pred_region
      _
    $region61: #{tpu_custom_call.1} parent=1 // pred_fallthru
      _
    // Predicated region
    $region62: #{tpu_custom_call.1} parent=1 // pred_check
      _
    $region63: #{tpu_custom_call.1} parent=1 // pred_check_branch
      %507 = sbr.rel (0) target = $region65
    $region64: #{tpu_custom_call.1} parent=1 // pred_region
      _
    $region65: #{tpu_custom_call.1} parent=1 // pred_fallthru
      _
    %508 = vsyncpa [#allocation3], 1
    %509 = vsyncpa [#allocation5], 1
    %510 = vsyncpa [#allocation8], 1

</llo_original>
